<compile_context>
chip_gen: v7x
topology: tpu7x:2x2x1
jax: 0.10.0
libtpu: 0.0.40
codegen_flags: <defaults>
</compile_context>

<pallas_src>
import functools

import jax
import jax.numpy as jnp
from jax.experimental import pallas as pl
from jax.experimental.pallas import tpu as pltpu

# ----------------------- configuration (small shapes) -----------------------
NUM_FEATURES = 7          # graph.node_features dim
NUM_CHANNELS = 8          # num_feature_channels -> initial embedding = 8x0e
NUM_HEADS = 2             # num_attention_heads
L_GEO = 4                 # geometric_repr = 1x0e + 1x1o  (dim 4)
D_KQ = 16                 # key_and_query_irreps dim (4x0e + 4x1o)
D_OUT = 16                # feature_output_repr dim (4x0e + 4x1o)
N_SCALAR = 4              # number of 0e channels inside each head output
RADIAL_HIDDEN = 16        # radial_network_hidden_units
NUM_OUT = 8               # number_of_output_features (-> 8x0e)
INVARIANT_DICT = {"0": "normal", "1": "inverse"}   # MixedHeads dictionary

N_NODES = 12
N_GRAPHS = 2
NODES_PER_GRAPH = N_NODES // N_GRAPHS

# ----- packed graph-data slab layout (lane width = N_NODES), 1 DMA -----
G_POS = 0                          # rows 0:3   -> pos^T            [3, N]
G_POOL = 3                         # rows 3:3+B -> batch one-hot    [B, N]
G_MASK = 8                         # rows 8:8+N -> dense adjacency  [N, N]
G_ROWS = G_MASK + N_NODES          # 20

# ----- packed parameter slab layout (lane width = H*(2*Dk+Ns)), 1 DMA -----
QKV_W = 2 * D_KQ + N_SCALAR        # per-head q|k|v_scalar column block = 36
P_COLS = NUM_HEADS * QKV_W         # 72
PR_WEMB = 0                        # rows 0:7   cols 0:NUM_CHANNELS
PR_BEMB = NUM_FEATURES             # row  7     cols 0:NUM_CHANNELS
PR_WQKV = 8                        # rows 8:16  cols 0:P_COLS
PR_WPROJ = 16                      # rows 16:24 cols 0:NUM_OUT
PR_WSH0 = 24                       # row  24    head h cols h*Ns:(h+1)*Ns
PR_WBIG = 32                       # rows 32:32+3N, head h cols h*Ns:(h+1)*Ns
P_ROWS = PR_WBIG + 3 * N_NODES     # 68


# ------------------------------ fused kernel ---------------------------------
def _fused_kernel(x_ref, pos_ref, gdata_ref, params_ref, rpar_ref, o_ref):
    """Whole forward pass on one VMEM-resident working set (no grid)."""
    f32 = jnp.float32
    bf16 = jnp.bfloat16
    inv_sqrt_dk = float(1.0 / (D_KQ ** 0.5))        # compile-time constant
    sqrt3 = float(3.0 ** 0.5)

    # ---- unpack small parameter slabs (static slices of one VMEM blob) ----
    p = params_ref
    w_emb = p[PR_WEMB:PR_WEMB + NUM_FEATURES, :NUM_CHANNELS]            # [F, C]
    b_emb = p[PR_BEMB:PR_BEMB + 1, :NUM_CHANNELS]                       # [1, C]
    w_qkv = p[PR_WQKV:PR_WQKV + NUM_CHANNELS, :]                        # [C, H*36]
    w_proj = p[PR_WPROJ:PR_WPROJ + NUM_HEADS * N_SCALAR, :NUM_OUT]      # [H*Ns, P]

    # ---- dense pairwise geometry computed in-kernel on [N, N] tiles ----
    mask = gdata_ref[G_MASK:G_MASK + N_NODES, :]                        # [N, N]
    pool = gdata_ref[G_POOL:G_POOL + N_GRAPHS, :]                       # [B, N]
    pos_rows = gdata_ref[G_POS:G_POS + 3, :]                            # [3, N]
    pos_cols = pos_ref[...]                                             # [N, 3]

    rel = []
    dist2 = jnp.zeros((N_NODES, N_NODES), f32)
    for c in range(3):                               # rel[t,s] = pos[t]-pos[s]
        rc = pos_cols[:, c:c + 1] - pos_rows[c:c + 1, :]                # [N, N]
        rel.append(rc)
        dist2 = dist2 + rc * rc
    is_edge = mask > 0.0
    dist2_safe = jnp.where(is_edge, dist2, 1.0)      # guard /0 at non-edges
    dist = jnp.sqrt(dist2_safe)                      # "normal" head distance
    inv_dist2 = 1.0 / dist2_safe                     # "inverse" head distance
    inv_d = jax.lax.rsqrt(dist2_safe)                # EUP
    # l=1 spherical harmonics of unit relative positions (component norm),
    # laid out lane-concatenated as [N, 3N]; l=0 (==1) is folded into v below.
    shw3 = jnp.concatenate([sqrt3 * rel[c] * inv_d for c in range(3)], axis=1)

    # ---- 3. embedding + fused per-head Q/K/V projection (one matmul each) ----
    x_emb = jnp.dot(x_ref[...].astype(bf16), w_emb.astype(bf16),
                    preferred_element_type=f32) + b_emb                 # [N, C]
    qkv = jnp.dot(x_emb.astype(bf16), w_qkv.astype(bf16),
                  preferred_element_type=f32)                           # [N, H*36]

    head_types = [INVARIANT_DICT[k] for k in sorted(INVARIANT_DICT, key=int)]
    head_scalars = []
    for h in range(NUM_HEADS):                       # unrolled, H == 2
        base = h * QKV_W
        q = qkv[:, base:base + D_KQ] * inv_sqrt_dk                      # [N, Dk]
        k = qkv[:, base + D_KQ:base + 2 * D_KQ]                         # [N, Dk]
        v = qkv[:, base + 2 * D_KQ:base + QKV_W]                        # [N, Ns]

        # attention logits; contraction absorbs the transpose (no XLU k.T)
        logits = jax.lax.dot_general(q.astype(bf16), k.astype(bf16),
                                     (((1,), (1,)), ((), ())),
                                     preferred_element_type=f32)        # [N, N]

        # 1. per-head edge invariant (MixedHeads dictionary)
        if head_types[h] == "normal":
            d = dist
        elif head_types[h] == "inverse":
            d = inv_dist2
        else:
            raise ValueError(head_types[h])

        # radial MLP: unrolled scalar-broadcast FMAs on the lane-dense tile,
        # all parameters read as SMEM scalars (kept off the MXU on purpose).
        radial = jnp.zeros_like(d)
        for j in range(RADIAL_HIDDEN):
            w1 = rpar_ref[h, j]
            b1 = rpar_ref[h, RADIAL_HIDDEN + j]
            w2 = rpar_ref[h, 2 * RADIAL_HIDDEN + j]
            radial = radial + jnp.maximum(d * w1 + b1, 0.0) * w2
        logits = logits + radial + rpar_ref[h, 3 * RADIAL_HIDDEN]

        # masked softmax over source nodes (rows with no incoming edges -> 0)
        masked = jnp.where(is_edge, logits, f32(-1e30))
        m = jnp.max(masked, axis=1, keepdims=True)
        pexp = jnp.exp(masked - m) * mask
        denom = jnp.sum(pexp, axis=1, keepdims=True)
        alpha = pexp * pl.reciprocal(jnp.maximum(denom, f32(1e-20)),
                                     approx=True)                       # [N, N]

        # message aggregation: ONE matmul folds (alpha @ v) plus every
        # spherical-harmonic rank-1 term (l=0 folded into v, l=1..3 via the
        # precomputed repeated-row weight block).
        wsh0 = p[PR_WSH0:PR_WSH0 + 1,
                 h * N_SCALAR:(h + 1) * N_SCALAR]                       # [1, Ns]
        wbig = p[PR_WBIG:PR_WBIG + 3 * N_NODES,
                 h * N_SCALAR:(h + 1) * N_SCALAR]                       # [3N, Ns]
        a_lhs = jnp.concatenate(
            [alpha, jnp.concatenate([alpha, alpha, alpha], axis=1) * shw3],
            axis=1)                                                     # [N, 4N]
        b_rhs = jnp.concatenate([v + wsh0, wbig], axis=0)               # [4N, Ns]
        head_scalars.append(
            jnp.dot(a_lhs.astype(bf16), b_rhs.astype(bf16),
                    preferred_element_type=f32))                        # [N, Ns]

    # 5-7. concat heads in-register, global_add_pool, 0e projection head.
    scalars = jnp.concatenate(head_scalars, axis=1)                     # [N, H*Ns]
    pooled = jnp.dot(pool.astype(bf16), scalars.astype(bf16),
                     preferred_element_type=f32)                        # [B, H*Ns]
    o_ref[...] = jnp.dot(pooled.astype(bf16), w_proj.astype(bf16),
                         preferred_element_type=f32)                    # [B, P]


def fused_forward(node_features, pos, gdata, packed_params, rparams):
    vmem = pl.BlockSpec(memory_space=pltpu.MemorySpace.VMEM)
    smem = pl.BlockSpec(memory_space=pltpu.MemorySpace.SMEM)
    return pl.pallas_call(
        _fused_kernel,
        out_shape=jax.ShapeDtypeStruct((N_GRAPHS, NUM_OUT), jnp.float32),
        in_specs=[vmem,   # node_features [N, F]
                  vmem,   # pos           [N, 3]
                  vmem,   # gdata slab    [G_ROWS, N]  (pos^T | pool | mask)
                  vmem,   # packed params [P_ROWS, P_COLS]
                  smem],  # radial-MLP scalars [H, 3*RH+1]
        out_specs=vmem,
    )(node_features, pos, gdata, packed_params, rparams)


# ------------------------------ parameters -----------------------------------
def init_params(key):
    ks = jax.random.split(key, 11)

    def rnd(k, shape, fan_in):
        return jax.random.normal(k, shape, jnp.float32) / jnp.sqrt(
            jnp.float32(fan_in))

    w_emb = rnd(ks[0], (NUM_FEATURES, NUM_CHANNELS), NUM_FEATURES)
    b_emb = 0.01 * jax.random.normal(ks[1], (1, NUM_CHANNELS), jnp.float32)
    wq = rnd(ks[2], (NUM_HEADS, NUM_CHANNELS, D_KQ), NUM_CHANNELS)
    wk = rnd(ks[3], (NUM_HEADS, NUM_CHANNELS, D_KQ), NUM_CHANNELS)
    wv = rnd(ks[4], (NUM_HEADS, NUM_CHANNELS, D_OUT), NUM_CHANNELS)
    wsh = rnd(ks[5], (NUM_HEADS, L_GEO, D_OUT), L_GEO)
    # projection_head: e3nn.o3.Linear(concat irreps -> NUM_OUT x 0e); only the
    # 0e -> 0e paths exist, so only the scalar rows are stored.
    wproj = jax.random.normal(ks[10], (NUM_HEADS * N_SCALAR, NUM_OUT),
                              jnp.float32) / jnp.sqrt(
        jnp.float32(NUM_HEADS * N_SCALAR))

    # radial-MLP parameters, SMEM-packed per head:
    #   [0:RH]=W1, [RH:2RH]=b1, [2RH:3RH]=W2, [3RH]=b2
    rw1 = rnd(ks[6], (NUM_HEADS, RADIAL_HIDDEN), 1)
    rb1 = 0.01 * jax.random.normal(ks[7], (NUM_HEADS, RADIAL_HIDDEN),
                                   jnp.float32)
    rw2 = rnd(ks[8], (NUM_HEADS, RADIAL_HIDDEN), RADIAL_HIDDEN)
    rb2 = 0.01 * jax.random.normal(ks[9], (NUM_HEADS, 1), jnp.float32)
    rparams = jnp.concatenate([rw1, rb1, rw2, rb2], axis=1)   # [H, 3*RH+1]

    # ----- pack all VMEM parameters into one slab (single DMA at launch) -----
    packed = jnp.zeros((P_ROWS, P_COLS), jnp.float32)
    packed = packed.at[PR_WEMB:PR_WEMB + NUM_FEATURES, :NUM_CHANNELS].set(w_emb)
    packed = packed.at[PR_BEMB, :NUM_CHANNELS].set(b_emb[0])
    packed = packed.at[PR_WPROJ:PR_WPROJ + NUM_HEADS * N_SCALAR,
                       :NUM_OUT].set(wproj)
    for h in range(NUM_HEADS):
        base = h * QKV_W
        packed = packed.at[PR_WQKV:PR_WQKV + NUM_CHANNELS,
                           base:base + D_KQ].set(wq[h])
        packed = packed.at[PR_WQKV:PR_WQKV + NUM_CHANNELS,
                           base + D_KQ:base + 2 * D_KQ].set(wk[h])
        # only the 0e value columns reach the 0e-only projection head
        packed = packed.at[PR_WQKV:PR_WQKV + NUM_CHANNELS,
                           base + 2 * D_KQ:base + QKV_W].set(
            wv[h][:, :N_SCALAR])
        packed = packed.at[PR_WSH0,
                           h * N_SCALAR:(h + 1) * N_SCALAR].set(
            wsh[h, 0, :N_SCALAR])
        # l=1..3 SH weight rows, each repeated N_NODES times so the in-kernel
        # SH aggregation is a single matmul against [alpha*Y1x|Y1y|Y1z].
        wbig = jnp.repeat(wsh[h, 1:L_GEO, :N_SCALAR], N_NODES, axis=0)  # [3N,Ns]
        packed = packed.at[PR_WBIG:PR_WBIG + 3 * N_NODES,
                           h * N_SCALAR:(h + 1) * N_SCALAR].set(wbig)

    return {"packed": packed, "rparams": rparams}


# ------------------------------ glue (plain JAX) -----------------------------
@functools.partial(jax.jit, static_argnames=())
def forward(node_features, pos, edge_index, batch, params):
    # Dense adjacency + batch one-hot + pos^T packed into ONE [G_ROWS, N] slab
    # (the only remaining XLA glue; pairwise geometry is computed in-kernel).
    src, tgt = edge_index[0], edge_index[1]
    mask = jnp.zeros((N_NODES, N_NODES), jnp.float32).at[tgt, src].set(1.0)
    pool = (batch[None, :] == jnp.arange(N_GRAPHS)[:, None]).astype(jnp.float32)
    gdata = jnp.zeros((G_ROWS, N_NODES), jnp.float32)
    gdata = gdata.at[G_POS:G_POS + 3, :].set(pos.T)
    gdata = gdata.at[G_POOL:G_POOL + N_GRAPHS, :].set(pool)
    gdata = gdata.at[G_MASK:G_MASK + N_NODES, :].set(mask)
    return fused_forward(node_features, pos, gdata, params["packed"],
                         params["rparams"])                            # [B, P]


# --------------------------------- driver ------------------------------------
if __name__ == "__main__":
    key = jax.random.PRNGKey(0)
    k_pos, k_feat, k_param = jax.random.split(key, 3)

    # graph.batch: two graphs of 6 nodes each
    batch = jnp.concatenate([
        jnp.zeros(NODES_PER_GRAPH, jnp.int32),
        jnp.ones(NODES_PER_GRAPH, jnp.int32),
    ])
    pos = jax.random.normal(k_pos, (N_NODES, 3), jnp.float32)
    node_features = jax.random.normal(k_feat, (N_NODES, NUM_FEATURES),
                                      jnp.float32)

    # bidirectional ring edges inside each graph: edge_index[0]=src, [1]=tgt
    edges = []
    for g in range(N_GRAPHS):
        off = g * NODES_PER_GRAPH
        for i in range(NODES_PER_GRAPH):
            j = (i + 1) % NODES_PER_GRAPH
            edges.append((off + i, off + j))
            edges.append((off + j, off + i))
    edge_index = jnp.array(edges, jnp.int32).T                        # [2, E]

    params = init_params(k_param)

    out = forward(node_features, pos, edge_index, batch, params)
    out = jax.block_until_ready(out)
    assert out.shape == (N_GRAPHS, NUM_OUT)
    assert bool(jnp.all(jnp.isfinite(out)))
    print("KERNEL_OK")
</pallas_src>

<mosaic_0001>
module attributes {stable_mosaic.version = 11 : i64} {
  func.func @_fused_kernel(%arg0: memref<12x7xf32, #tpu.memory_space<vmem>>, %arg1: memref<12x3xf32, #tpu.memory_space<vmem>>, %arg2: memref<20x12xf32, #tpu.memory_space<vmem>>, %arg3: memref<68x72xf32, #tpu.memory_space<vmem>>, %arg4: memref<2x49xf32, #tpu.memory_space<smem>>, %arg5: memref<2x8xf32, #tpu.memory_space<vmem>>) attributes {dimension_semantics = [], scalar_prefetch = 0 : i64, scratch_operands = 0 : i64, tpu.core_type = #tpu.core_type<tc>} {
    %c0 = arith.constant 0 : index
    %c0_0 = arith.constant 0 : index
    %0 = vector.load %arg3[%c0, %c0_0] : memref<68x72xf32, #tpu.memory_space<vmem>>, vector<7x8xf32>
    %c7 = arith.constant 7 : index
    %c0_1 = arith.constant 0 : index
    %1 = vector.load %arg3[%c7, %c0_1] : memref<68x72xf32, #tpu.memory_space<vmem>>, vector<1x8xf32>
    %c8 = arith.constant 8 : index
    %c0_2 = arith.constant 0 : index
    %2 = vector.load %arg3[%c8, %c0_2] : memref<68x72xf32, #tpu.memory_space<vmem>>, vector<8x72xf32>
    %c16 = arith.constant 16 : index
    %c0_3 = arith.constant 0 : index
    %3 = vector.load %arg3[%c16, %c0_3] : memref<68x72xf32, #tpu.memory_space<vmem>>, vector<8x8xf32>
    %c8_4 = arith.constant 8 : index
    %c0_5 = arith.constant 0 : index
    %4 = vector.load %arg2[%c8_4, %c0_5] : memref<20x12xf32, #tpu.memory_space<vmem>>, vector<12x12xf32>
    %c3 = arith.constant 3 : index
    %c0_6 = arith.constant 0 : index
    %5 = vector.load %arg2[%c3, %c0_6] : memref<20x12xf32, #tpu.memory_space<vmem>>, vector<2x12xf32>
    %c0_7 = arith.constant 0 : index
    %c0_8 = arith.constant 0 : index
    %6 = vector.load %arg2[%c0_7, %c0_8] : memref<20x12xf32, #tpu.memory_space<vmem>>, vector<3x12xf32>
    %c0_9 = arith.constant 0 : index
    %c0_10 = arith.constant 0 : index
    %7 = vector.load %arg1[%c0_9, %c0_10] : memref<12x3xf32, #tpu.memory_space<vmem>>, vector<12x3xf32>
    %cst = arith.constant 0.000000e+00 : f32
    %8 = vector.broadcast %cst : f32 to vector<12x12xf32>
    %9 = vector.extract_strided_slice %7 {offsets = [0, 0], sizes = [12, 1], strides = [1, 1]} : vector<12x3xf32> to vector<12x1xf32>
    %10 = vector.extract_strided_slice %6 {offsets = [0, 0], sizes = [1, 12], strides = [1, 1]} : vector<3x12xf32> to vector<1x12xf32>
    %11 = vector.broadcast %9 : vector<12x1xf32> to vector<12x12xf32>
    %12 = vector.broadcast %10 : vector<1x12xf32> to vector<12x12xf32>
    %13 = arith.subf %11, %12 : vector<12x12xf32>
    %14 = arith.mulf %13, %13 : vector<12x12xf32>
    %15 = arith.addf %8, %14 : vector<12x12xf32>
    %16 = vector.extract_strided_slice %7 {offsets = [0, 1], sizes = [12, 1], strides = [1, 1]} : vector<12x3xf32> to vector<12x1xf32>
    %17 = vector.extract_strided_slice %6 {offsets = [1, 0], sizes = [1, 12], strides = [1, 1]} : vector<3x12xf32> to vector<1x12xf32>
    %18 = vector.broadcast %16 : vector<12x1xf32> to vector<12x12xf32>
    %19 = vector.broadcast %17 : vector<1x12xf32> to vector<12x12xf32>
    %20 = arith.subf %18, %19 : vector<12x12xf32>
    %21 = arith.mulf %20, %20 : vector<12x12xf32>
    %22 = arith.addf %15, %21 : vector<12x12xf32>
    %23 = vector.extract_strided_slice %7 {offsets = [0, 2], sizes = [12, 1], strides = [1, 1]} : vector<12x3xf32> to vector<12x1xf32>
    %24 = vector.extract_strided_slice %6 {offsets = [2, 0], sizes = [1, 12], strides = [1, 1]} : vector<3x12xf32> to vector<1x12xf32>
    %25 = vector.broadcast %23 : vector<12x1xf32> to vector<12x12xf32>
    %26 = vector.broadcast %24 : vector<1x12xf32> to vector<12x12xf32>
    %27 = arith.subf %25, %26 : vector<12x12xf32>
    %28 = arith.mulf %27, %27 : vector<12x12xf32>
    %29 = arith.addf %22, %28 : vector<12x12xf32>
    %cst_11 = arith.constant 0.000000e+00 : f32
    %30 = vector.broadcast %cst_11 : f32 to vector<12x12xf32>
    %31 = arith.cmpf ogt, %4, %30 : vector<12x12xf32>
    %cst_12 = arith.constant 1.000000e+00 : f32
    %32 = vector.broadcast %cst_12 : f32 to vector<12x12xf32>
    %33 = arith.select %31, %29, %32 : vector<12x12xi1>, vector<12x12xf32>
    %34 = math.sqrt %33 : vector<12x12xf32>
    %cst_13 = arith.constant 1.000000e+00 : f32
    %35 = vector.broadcast %cst_13 : f32 to vector<12x12xf32>
    %36 = arith.divf %35, %33 : vector<12x12xf32>
    %37 = math.rsqrt %33 : vector<12x12xf32>
    %cst_14 = arith.constant 1.73205078 : f32
    %38 = vector.broadcast %cst_14 : f32 to vector<12x12xf32>
    %39 = arith.mulf %38, %13 : vector<12x12xf32>
    %40 = arith.mulf %39, %37 : vector<12x12xf32>
    %cst_15 = arith.constant 1.73205078 : f32
    %41 = vector.broadcast %cst_15 : f32 to vector<12x12xf32>
    %42 = arith.mulf %41, %20 : vector<12x12xf32>
    %43 = arith.mulf %42, %37 : vector<12x12xf32>
    %cst_16 = arith.constant 1.73205078 : f32
    %44 = vector.broadcast %cst_16 : f32 to vector<12x12xf32>
    %45 = arith.mulf %44, %27 : vector<12x12xf32>
    %46 = arith.mulf %45, %37 : vector<12x12xf32>
    %47 = tpu.concatenate %40, %43, %46 in 1 : vector<12x12xf32>, vector<12x12xf32>, vector<12x12xf32> -> vector<12x36xf32>
    %c0_17 = arith.constant 0 : index
    %c0_18 = arith.constant 0 : index
    %48 = vector.load %arg0[%c0_17, %c0_18] : memref<12x7xf32, #tpu.memory_space<vmem>>, vector<12x7xf32>
    %49 = arith.truncf %48 : vector<12x7xf32> to vector<12x7xbf16>
    %50 = arith.truncf %0 : vector<7x8xf32> to vector<7x8xbf16>
    %cst_19 = arith.constant dense<0.000000e+00> : vector<12x8xf32>
    %51 = tpu.matmul %49, %50, %cst_19 {dimension_numbers = #tpu.dot_dimension_numbers<[1], [0], [0], [1], [0, 0, 1, 1], [], []>} : vector<12x7xbf16>, vector<7x8xbf16>, vector<12x8xf32> -> vector<12x8xf32>
    %52 = vector.broadcast %1 : vector<1x8xf32> to vector<12x8xf32>
    %53 = arith.addf %51, %52 : vector<12x8xf32>
    %54 = arith.truncf %53 : vector<12x8xf32> to vector<12x8xbf16>
    %55 = arith.truncf %2 : vector<8x72xf32> to vector<8x72xbf16>
    %cst_20 = arith.constant dense<0.000000e+00> : vector<12x72xf32>
    %56 = tpu.matmul %54, %55, %cst_20 {dimension_numbers = #tpu.dot_dimension_numbers<[1], [0], [0], [1], [0, 0, 1, 1], [], []>} : vector<12x8xbf16>, vector<8x72xbf16>, vector<12x72xf32> -> vector<12x72xf32>
    %57 = vector.extract_strided_slice %56 {offsets = [0, 0], sizes = [12, 16], strides = [1, 1]} : vector<12x72xf32> to vector<12x16xf32>
    %cst_21 = arith.constant 2.500000e-01 : f32
    %58 = vector.broadcast %cst_21 : f32 to vector<12x16xf32>
    %59 = arith.mulf %57, %58 : vector<12x16xf32>
    %60 = vector.extract_strided_slice %56 {offsets = [0, 16], sizes = [12, 16], strides = [1, 1]} : vector<12x72xf32> to vector<12x16xf32>
    %61 = vector.extract_strided_slice %56 {offsets = [0, 32], sizes = [12, 4], strides = [1, 1]} : vector<12x72xf32> to vector<12x4xf32>
    %62 = arith.truncf %59 : vector<12x16xf32> to vector<12x16xbf16>
    %63 = arith.truncf %60 : vector<12x16xf32> to vector<12x16xbf16>
    %cst_22 = arith.constant dense<0.000000e+00> : vector<12x12xf32>
    %64 = tpu.matmul %62, %63, %cst_22 {dimension_numbers = #tpu.dot_dimension_numbers<[1], [1], [0], [0], [0, 0, 1, 0], [], []>} : vector<12x16xbf16>, vector<12x16xbf16>, vector<12x12xf32> -> vector<12x12xf32>
    %cst_23 = arith.constant 0.000000e+00 : f32
    %65 = vector.broadcast %cst_23 : f32 to vector<12x12xf32>
    %c0_24 = arith.constant 0 : index
    %c0_25 = arith.constant 0 : index
    %66 = memref.load %arg4[%c0_24, %c0_25] : memref<2x49xf32, #tpu.memory_space<smem>>
    %c0_26 = arith.constant 0 : index
    %c16_27 = arith.constant 16 : index
    %67 = memref.load %arg4[%c0_26, %c16_27] : memref<2x49xf32, #tpu.memory_space<smem>>
    %c0_28 = arith.constant 0 : index
    %c32 = arith.constant 32 : index
    %68 = memref.load %arg4[%c0_28, %c32] : memref<2x49xf32, #tpu.memory_space<smem>>
    %69 = vector.broadcast %66 : f32 to vector<12x12xf32>
    %70 = arith.mulf %34, %69 : vector<12x12xf32>
    %71 = vector.broadcast %67 : f32 to vector<12x12xf32>
    %72 = arith.addf %70, %71 : vector<12x12xf32>
    %cst_29 = arith.constant 0.000000e+00 : f32
    %73 = vector.broadcast %cst_29 : f32 to vector<12x12xf32>
    %74 = arith.maximumf %72, %73 : vector<12x12xf32>
    %75 = vector.broadcast %68 : f32 to vector<12x12xf32>
    %76 = arith.mulf %74, %75 : vector<12x12xf32>
    %77 = arith.addf %65, %76 : vector<12x12xf32>
    %c0_30 = arith.constant 0 : index
    %c1 = arith.constant 1 : index
    %78 = memref.load %arg4[%c0_30, %c1] : memref<2x49xf32, #tpu.memory_space<smem>>
    %c0_31 = arith.constant 0 : index
    %c17 = arith.constant 17 : index
    %79 = memref.load %arg4[%c0_31, %c17] : memref<2x49xf32, #tpu.memory_space<smem>>
    %c0_32 = arith.constant 0 : index
    %c33 = arith.constant 33 : index
    %80 = memref.load %arg4[%c0_32, %c33] : memref<2x49xf32, #tpu.memory_space<smem>>
    %81 = vector.broadcast %78 : f32 to vector<12x12xf32>
    %82 = arith.mulf %34, %81 : vector<12x12xf32>
    %83 = vector.broadcast %79 : f32 to vector<12x12xf32>
    %84 = arith.addf %82, %83 : vector<12x12xf32>
    %cst_33 = arith.constant 0.000000e+00 : f32
    %85 = vector.broadcast %cst_33 : f32 to vector<12x12xf32>
    %86 = arith.maximumf %84, %85 : vector<12x12xf32>
    %87 = vector.broadcast %80 : f32 to vector<12x12xf32>
    %88 = arith.mulf %86, %87 : vector<12x12xf32>
    %89 = arith.addf %77, %88 : vector<12x12xf32>
    %c0_34 = arith.constant 0 : index
    %c2 = arith.constant 2 : index
    %90 = memref.load %arg4[%c0_34, %c2] : memref<2x49xf32, #tpu.memory_space<smem>>
    %c0_35 = arith.constant 0 : index
    %c18 = arith.constant 18 : index
    %91 = memref.load %arg4[%c0_35, %c18] : memref<2x49xf32, #tpu.memory_space<smem>>
    %c0_36 = arith.constant 0 : index
    %c34 = arith.constant 34 : index
    %92 = memref.load %arg4[%c0_36, %c34] : memref<2x49xf32, #tpu.memory_space<smem>>
    %93 = vector.broadcast %90 : f32 to vector<12x12xf32>
    %94 = arith.mulf %34, %93 : vector<12x12xf32>
    %95 = vector.broadcast %91 : f32 to vector<12x12xf32>
    %96 = arith.addf %94, %95 : vector<12x12xf32>
    %cst_37 = arith.constant 0.000000e+00 : f32
    %97 = vector.broadcast %cst_37 : f32 to vector<12x12xf32>
    %98 = arith.maximumf %96, %97 : vector<12x12xf32>
    %99 = vector.broadcast %92 : f32 to vector<12x12xf32>
    %100 = arith.mulf %98, %99 : vector<12x12xf32>
    %101 = arith.addf %89, %100 : vector<12x12xf32>
    %c0_38 = arith.constant 0 : index
    %c3_39 = arith.constant 3 : index
    %102 = memref.load %arg4[%c0_38, %c3_39] : memref<2x49xf32, #tpu.memory_space<smem>>
    %c0_40 = arith.constant 0 : index
    %c19 = arith.constant 19 : index
    %103 = memref.load %arg4[%c0_40, %c19] : memref<2x49xf32, #tpu.memory_space<smem>>
    %c0_41 = arith.constant 0 : index
    %c35 = arith.constant 35 : index
    %104 = memref.load %arg4[%c0_41, %c35] : memref<2x49xf32, #tpu.memory_space<smem>>
    %105 = vector.broadcast %102 : f32 to vector<12x12xf32>
    %106 = arith.mulf %34, %105 : vector<12x12xf32>
    %107 = vector.broadcast %103 : f32 to vector<12x12xf32>
    %108 = arith.addf %106, %107 : vector<12x12xf32>
    %cst_42 = arith.constant 0.000000e+00 : f32
    %109 = vector.broadcast %cst_42 : f32 to vector<12x12xf32>
    %110 = arith.maximumf %108, %109 : vector<12x12xf32>
    %111 = vector.broadcast %104 : f32 to vector<12x12xf32>
    %112 = arith.mulf %110, %111 : vector<12x12xf32>
    %113 = arith.addf %101, %112 : vector<12x12xf32>
    %c0_43 = arith.constant 0 : index
    %c4 = arith.constant 4 : index
    %114 = memref.load %arg4[%c0_43, %c4] : memref<2x49xf32, #tpu.memory_space<smem>>
    %c0_44 = arith.constant 0 : index
    %c20 = arith.constant 20 : index
    %115 = memref.load %arg4[%c0_44, %c20] : memref<2x49xf32, #tpu.memory_space<smem>>
    %c0_45 = arith.constant 0 : index
    %c36 = arith.constant 36 : index
    %116 = memref.load %arg4[%c0_45, %c36] : memref<2x49xf32, #tpu.memory_space<smem>>
    %117 = vector.broadcast %114 : f32 to vector<12x12xf32>
    %118 = arith.mulf %34, %117 : vector<12x12xf32>
    %119 = vector.broadcast %115 : f32 to vector<12x12xf32>
    %120 = arith.addf %118, %119 : vector<12x12xf32>
    %cst_46 = arith.constant 0.000000e+00 : f32
    %121 = vector.broadcast %cst_46 : f32 to vector<12x12xf32>
    %122 = arith.maximumf %120, %121 : vector<12x12xf32>
    %123 = vector.broadcast %116 : f32 to vector<12x12xf32>
    %124 = arith.mulf %122, %123 : vector<12x12xf32>
    %125 = arith.addf %113, %124 : vector<12x12xf32>
    %c0_47 = arith.constant 0 : index
    %c5 = arith.constant 5 : index
    %126 = memref.load %arg4[%c0_47, %c5] : memref<2x49xf32, #tpu.memory_space<smem>>
    %c0_48 = arith.constant 0 : index
    %c21 = arith.constant 21 : index
    %127 = memref.load %arg4[%c0_48, %c21] : memref<2x49xf32, #tpu.memory_space<smem>>
    %c0_49 = arith.constant 0 : index
    %c37 = arith.constant 37 : index
    %128 = memref.load %arg4[%c0_49, %c37] : memref<2x49xf32, #tpu.memory_space<smem>>
    %129 = vector.broadcast %126 : f32 to vector<12x12xf32>
    %130 = arith.mulf %34, %129 : vector<12x12xf32>
    %131 = vector.broadcast %127 : f32 to vector<12x12xf32>
    %132 = arith.addf %130, %131 : vector<12x12xf32>
    %cst_50 = arith.constant 0.000000e+00 : f32
    %133 = vector.broadcast %cst_50 : f32 to vector<12x12xf32>
    %134 = arith.maximumf %132, %133 : vector<12x12xf32>
    %135 = vector.broadcast %128 : f32 to vector<12x12xf32>
    %136 = arith.mulf %134, %135 : vector<12x12xf32>
    %137 = arith.addf %125, %136 : vector<12x12xf32>
    %c0_51 = arith.constant 0 : index
    %c6 = arith.constant 6 : index
    %138 = memref.load %arg4[%c0_51, %c6] : memref<2x49xf32, #tpu.memory_space<smem>>
    %c0_52 = arith.constant 0 : index
    %c22 = arith.constant 22 : index
    %139 = memref.load %arg4[%c0_52, %c22] : memref<2x49xf32, #tpu.memory_space<smem>>
    %c0_53 = arith.constant 0 : index
    %c38 = arith.constant 38 : index
    %140 = memref.load %arg4[%c0_53, %c38] : memref<2x49xf32, #tpu.memory_space<smem>>
    %141 = vector.broadcast %138 : f32 to vector<12x12xf32>
    %142 = arith.mulf %34, %141 : vector<12x12xf32>
    %143 = vector.broadcast %139 : f32 to vector<12x12xf32>
    %144 = arith.addf %142, %143 : vector<12x12xf32>
    %cst_54 = arith.constant 0.000000e+00 : f32
    %145 = vector.broadcast %cst_54 : f32 to vector<12x12xf32>
    %146 = arith.maximumf %144, %145 : vector<12x12xf32>
    %147 = vector.broadcast %140 : f32 to vector<12x12xf32>
    %148 = arith.mulf %146, %147 : vector<12x12xf32>
    %149 = arith.addf %137, %148 : vector<12x12xf32>
    %c0_55 = arith.constant 0 : index
    %c7_56 = arith.constant 7 : index
    %150 = memref.load %arg4[%c0_55, %c7_56] : memref<2x49xf32, #tpu.memory_space<smem>>
    %c0_57 = arith.constant 0 : index
    %c23 = arith.constant 23 : index
    %151 = memref.load %arg4[%c0_57, %c23] : memref<2x49xf32, #tpu.memory_space<smem>>
    %c0_58 = arith.constant 0 : index
    %c39 = arith.constant 39 : index
    %152 = memref.load %arg4[%c0_58, %c39] : memref<2x49xf32, #tpu.memory_space<smem>>
    %153 = vector.broadcast %150 : f32 to vector<12x12xf32>
    %154 = arith.mulf %34, %153 : vector<12x12xf32>
    %155 = vector.broadcast %151 : f32 to vector<12x12xf32>
    %156 = arith.addf %154, %155 : vector<12x12xf32>
    %cst_59 = arith.constant 0.000000e+00 : f32
    %157 = vector.broadcast %cst_59 : f32 to vector<12x12xf32>
    %158 = arith.maximumf %156, %157 : vector<12x12xf32>
    %159 = vector.broadcast %152 : f32 to vector<12x12xf32>
    %160 = arith.mulf %158, %159 : vector<12x12xf32>
    %161 = arith.addf %149, %160 : vector<12x12xf32>
    %c0_60 = arith.constant 0 : index
    %c8_61 = arith.constant 8 : index
    %162 = memref.load %arg4[%c0_60, %c8_61] : memref<2x49xf32, #tpu.memory_space<smem>>
    %c0_62 = arith.constant 0 : index
    %c24 = arith.constant 24 : index
    %163 = memref.load %arg4[%c0_62, %c24] : memref<2x49xf32, #tpu.memory_space<smem>>
    %c0_63 = arith.constant 0 : index
    %c40 = arith.constant 40 : index
    %164 = memref.load %arg4[%c0_63, %c40] : memref<2x49xf32, #tpu.memory_space<smem>>
    %165 = vector.broadcast %162 : f32 to vector<12x12xf32>
    %166 = arith.mulf %34, %165 : vector<12x12xf32>
    %167 = vector.broadcast %163 : f32 to vector<12x12xf32>
    %168 = arith.addf %166, %167 : vector<12x12xf32>
    %cst_64 = arith.constant 0.000000e+00 : f32
    %169 = vector.broadcast %cst_64 : f32 to vector<12x12xf32>
    %170 = arith.maximumf %168, %169 : vector<12x12xf32>
    %171 = vector.broadcast %164 : f32 to vector<12x12xf32>
    %172 = arith.mulf %170, %171 : vector<12x12xf32>
    %173 = arith.addf %161, %172 : vector<12x12xf32>
    %c0_65 = arith.constant 0 : index
    %c9 = arith.constant 9 : index
    %174 = memref.load %arg4[%c0_65, %c9] : memref<2x49xf32, #tpu.memory_space<smem>>
    %c0_66 = arith.constant 0 : index
    %c25 = arith.constant 25 : index
    %175 = memref.load %arg4[%c0_66, %c25] : memref<2x49xf32, #tpu.memory_space<smem>>
    %c0_67 = arith.constant 0 : index
    %c41 = arith.constant 41 : index
    %176 = memref.load %arg4[%c0_67, %c41] : memref<2x49xf32, #tpu.memory_space<smem>>
    %177 = vector.broadcast %174 : f32 to vector<12x12xf32>
    %178 = arith.mulf %34, %177 : vector<12x12xf32>
    %179 = vector.broadcast %175 : f32 to vector<12x12xf32>
    %180 = arith.addf %178, %179 : vector<12x12xf32>
    %cst_68 = arith.constant 0.000000e+00 : f32
    %181 = vector.broadcast %cst_68 : f32 to vector<12x12xf32>
    %182 = arith.maximumf %180, %181 : vector<12x12xf32>
    %183 = vector.broadcast %176 : f32 to vector<12x12xf32>
    %184 = arith.mulf %182, %183 : vector<12x12xf32>
    %185 = arith.addf %173, %184 : vector<12x12xf32>
    %c0_69 = arith.constant 0 : index
    %c10 = arith.constant 10 : index
    %186 = memref.load %arg4[%c0_69, %c10] : memref<2x49xf32, #tpu.memory_space<smem>>
    %c0_70 = arith.constant 0 : index
    %c26 = arith.constant 26 : index
    %187 = memref.load %arg4[%c0_70, %c26] : memref<2x49xf32, #tpu.memory_space<smem>>
    %c0_71 = arith.constant 0 : index
    %c42 = arith.constant 42 : index
    %188 = memref.load %arg4[%c0_71, %c42] : memref<2x49xf32, #tpu.memory_space<smem>>
    %189 = vector.broadcast %186 : f32 to vector<12x12xf32>
    %190 = arith.mulf %34, %189 : vector<12x12xf32>
    %191 = vector.broadcast %187 : f32 to vector<12x12xf32>
    %192 = arith.addf %190, %191 : vector<12x12xf32>
    %cst_72 = arith.constant 0.000000e+00 : f32
    %193 = vector.broadcast %cst_72 : f32 to vector<12x12xf32>
    %194 = arith.maximumf %192, %193 : vector<12x12xf32>
    %195 = vector.broadcast %188 : f32 to vector<12x12xf32>
    %196 = arith.mulf %194, %195 : vector<12x12xf32>
    %197 = arith.addf %185, %196 : vector<12x12xf32>
    %c0_73 = arith.constant 0 : index
    %c11 = arith.constant 11 : index
    %198 = memref.load %arg4[%c0_73, %c11] : memref<2x49xf32, #tpu.memory_space<smem>>
    %c0_74 = arith.constant 0 : index
    %c27 = arith.constant 27 : index
    %199 = memref.load %arg4[%c0_74, %c27] : memref<2x49xf32, #tpu.memory_space<smem>>
    %c0_75 = arith.constant 0 : index
    %c43 = arith.constant 43 : index
    %200 = memref.load %arg4[%c0_75, %c43] : memref<2x49xf32, #tpu.memory_space<smem>>
    %201 = vector.broadcast %198 : f32 to vector<12x12xf32>
    %202 = arith.mulf %34, %201 : vector<12x12xf32>
    %203 = vector.broadcast %199 : f32 to vector<12x12xf32>
    %204 = arith.addf %202, %203 : vector<12x12xf32>
    %cst_76 = arith.constant 0.000000e+00 : f32
    %205 = vector.broadcast %cst_76 : f32 to vector<12x12xf32>
    %206 = arith.maximumf %204, %205 : vector<12x12xf32>
    %207 = vector.broadcast %200 : f32 to vector<12x12xf32>
    %208 = arith.mulf %206, %207 : vector<12x12xf32>
    %209 = arith.addf %197, %208 : vector<12x12xf32>
    %c0_77 = arith.constant 0 : index
    %c12 = arith.constant 12 : index
    %210 = memref.load %arg4[%c0_77, %c12] : memref<2x49xf32, #tpu.memory_space<smem>>
    %c0_78 = arith.constant 0 : index
    %c28 = arith.constant 28 : index
    %211 = memref.load %arg4[%c0_78, %c28] : memref<2x49xf32, #tpu.memory_space<smem>>
    %c0_79 = arith.constant 0 : index
    %c44 = arith.constant 44 : index
    %212 = memref.load %arg4[%c0_79, %c44] : memref<2x49xf32, #tpu.memory_space<smem>>
    %213 = vector.broadcast %210 : f32 to vector<12x12xf32>
    %214 = arith.mulf %34, %213 : vector<12x12xf32>
    %215 = vector.broadcast %211 : f32 to vector<12x12xf32>
    %216 = arith.addf %214, %215 : vector<12x12xf32>
    %cst_80 = arith.constant 0.000000e+00 : f32
    %217 = vector.broadcast %cst_80 : f32 to vector<12x12xf32>
    %218 = arith.maximumf %216, %217 : vector<12x12xf32>
    %219 = vector.broadcast %212 : f32 to vector<12x12xf32>
    %220 = arith.mulf %218, %219 : vector<12x12xf32>
    %221 = arith.addf %209, %220 : vector<12x12xf32>
    %c0_81 = arith.constant 0 : index
    %c13 = arith.constant 13 : index
    %222 = memref.load %arg4[%c0_81, %c13] : memref<2x49xf32, #tpu.memory_space<smem>>
    %c0_82 = arith.constant 0 : index
    %c29 = arith.constant 29 : index
    %223 = memref.load %arg4[%c0_82, %c29] : memref<2x49xf32, #tpu.memory_space<smem>>
    %c0_83 = arith.constant 0 : index
    %c45 = arith.constant 45 : index
    %224 = memref.load %arg4[%c0_83, %c45] : memref<2x49xf32, #tpu.memory_space<smem>>
    %225 = vector.broadcast %222 : f32 to vector<12x12xf32>
    %226 = arith.mulf %34, %225 : vector<12x12xf32>
    %227 = vector.broadcast %223 : f32 to vector<12x12xf32>
    %228 = arith.addf %226, %227 : vector<12x12xf32>
    %cst_84 = arith.constant 0.000000e+00 : f32
    %229 = vector.broadcast %cst_84 : f32 to vector<12x12xf32>
    %230 = arith.maximumf %228, %229 : vector<12x12xf32>
    %231 = vector.broadcast %224 : f32 to vector<12x12xf32>
    %232 = arith.mulf %230, %231 : vector<12x12xf32>
    %233 = arith.addf %221, %232 : vector<12x12xf32>
    %c0_85 = arith.constant 0 : index
    %c14 = arith.constant 14 : index
    %234 = memref.load %arg4[%c0_85, %c14] : memref<2x49xf32, #tpu.memory_space<smem>>
    %c0_86 = arith.constant 0 : index
    %c30 = arith.constant 30 : index
    %235 = memref.load %arg4[%c0_86, %c30] : memref<2x49xf32, #tpu.memory_space<smem>>
    %c0_87 = arith.constant 0 : index
    %c46 = arith.constant 46 : index
    %236 = memref.load %arg4[%c0_87, %c46] : memref<2x49xf32, #tpu.memory_space<smem>>
    %237 = vector.broadcast %234 : f32 to vector<12x12xf32>
    %238 = arith.mulf %34, %237 : vector<12x12xf32>
    %239 = vector.broadcast %235 : f32 to vector<12x12xf32>
    %240 = arith.addf %238, %239 : vector<12x12xf32>
    %cst_88 = arith.constant 0.000000e+00 : f32
    %241 = vector.broadcast %cst_88 : f32 to vector<12x12xf32>
    %242 = arith.maximumf %240, %241 : vector<12x12xf32>
    %243 = vector.broadcast %236 : f32 to vector<12x12xf32>
    %244 = arith.mulf %242, %243 : vector<12x12xf32>
    %245 = arith.addf %233, %244 : vector<12x12xf32>
    %c0_89 = arith.constant 0 : index
    %c15 = arith.constant 15 : index
    %246 = memref.load %arg4[%c0_89, %c15] : memref<2x49xf32, #tpu.memory_space<smem>>
    %c0_90 = arith.constant 0 : index
    %c31 = arith.constant 31 : index
    %247 = memref.load %arg4[%c0_90, %c31] : memref<2x49xf32, #tpu.memory_space<smem>>
    %c0_91 = arith.constant 0 : index
    %c47 = arith.constant 47 : index
    %248 = memref.load %arg4[%c0_91, %c47] : memref<2x49xf32, #tpu.memory_space<smem>>
    %249 = vector.broadcast %246 : f32 to vector<12x12xf32>
    %250 = arith.mulf %34, %249 : vector<12x12xf32>
    %251 = vector.broadcast %247 : f32 to vector<12x12xf32>
    %252 = arith.addf %250, %251 : vector<12x12xf32>
    %cst_92 = arith.constant 0.000000e+00 : f32
    %253 = vector.broadcast %cst_92 : f32 to vector<12x12xf32>
    %254 = arith.maximumf %252, %253 : vector<12x12xf32>
    %255 = vector.broadcast %248 : f32 to vector<12x12xf32>
    %256 = arith.mulf %254, %255 : vector<12x12xf32>
    %257 = arith.addf %245, %256 : vector<12x12xf32>
    %258 = arith.addf %64, %257 : vector<12x12xf32>
    %c0_93 = arith.constant 0 : index
    %c48 = arith.constant 48 : index
    %259 = memref.load %arg4[%c0_93, %c48] : memref<2x49xf32, #tpu.memory_space<smem>>
    %260 = vector.broadcast %259 : f32 to vector<12x12xf32>
    %261 = arith.addf %258, %260 : vector<12x12xf32>
    %cst_94 = arith.constant -1.000000e+30 : f32
    %262 = vector.broadcast %cst_94 : f32 to vector<12x12xf32>
    %263 = arith.select %31, %261, %262 : vector<12x12xi1>, vector<12x12xf32>
    %cst_95 = arith.constant dense<0xFF800000> : vector<12xf32>
    %264 = vector.multi_reduction <maximumf>, %263, %cst_95 [1] : vector<12x12xf32> to vector<12xf32>
    %265 = vector.shape_cast %264 : vector<12xf32> to vector<12x1xf32>
    %266 = vector.broadcast %265 : vector<12x1xf32> to vector<12x12xf32>
    %267 = arith.subf %263, %266 : vector<12x12xf32>
    %268 = math.exp %267 : vector<12x12xf32>
    %269 = arith.mulf %268, %4 : vector<12x12xf32>
    %cst_96 = arith.constant dense<0.000000e+00> : vector<12xf32>
    %270 = vector.multi_reduction <add>, %269, %cst_96 [1] : vector<12x12xf32> to vector<12xf32>
    %271 = vector.shape_cast %270 : vector<12xf32> to vector<12x1xf32>
    %cst_97 = arith.constant 9.99999968E-21 : f32
    %272 = vector.broadcast %cst_97 : f32 to vector<12x1xf32>
    %273 = arith.maximumf %271, %272 : vector<12x1xf32>
    %274 = tpu.reciprocal %273 {approx = true} : vector<12x1xf32> -> vector<12x1xf32>
    %275 = vector.broadcast %274 : vector<12x1xf32> to vector<12x12xf32>
    %276 = arith.mulf %269, %275 : vector<12x12xf32>
    %c24_98 = arith.constant 24 : index
    %c0_99 = arith.constant 0 : index
    %277 = vector.load %arg3[%c24_98, %c0_99] : memref<68x72xf32, #tpu.memory_space<vmem>>, vector<1x4xf32>
    %c32_100 = arith.constant 32 : index
    %c0_101 = arith.constant 0 : index
    %278 = vector.load %arg3[%c32_100, %c0_101] : memref<68x72xf32, #tpu.memory_space<vmem>>, vector<36x4xf32>
    %279 = tpu.concatenate %276, %276, %276 in 1 : vector<12x12xf32>, vector<12x12xf32>, vector<12x12xf32> -> vector<12x36xf32>
    %280 = arith.mulf %279, %47 : vector<12x36xf32>
    %281 = tpu.concatenate %276, %280 in 1 : vector<12x12xf32>, vector<12x36xf32> -> vector<12x48xf32>
    %282 = vector.broadcast %277 : vector<1x4xf32> to vector<12x4xf32>
    %283 = arith.addf %61, %282 : vector<12x4xf32>
    %284 = tpu.concatenate %283, %278 in 0 : vector<12x4xf32>, vector<36x4xf32> -> vector<48x4xf32>
    %285 = arith.truncf %281 : vector<12x48xf32> to vector<12x48xbf16>
    %286 = arith.truncf %284 : vector<48x4xf32> to vector<48x4xbf16>
    %cst_102 = arith.constant dense<0.000000e+00> : vector<12x4xf32>
    %287 = tpu.matmul %285, %286, %cst_102 {dimension_numbers = #tpu.dot_dimension_numbers<[1], [0], [0], [1], [0, 0, 1, 1], [], []>} : vector<12x48xbf16>, vector<48x4xbf16>, vector<12x4xf32> -> vector<12x4xf32>
    %288 = vector.extract_strided_slice %56 {offsets = [0, 36], sizes = [12, 16], strides = [1, 1]} : vector<12x72xf32> to vector<12x16xf32>
    %cst_103 = arith.constant 2.500000e-01 : f32
    %289 = vector.broadcast %cst_103 : f32 to vector<12x16xf32>
    %290 = arith.mulf %288, %289 : vector<12x16xf32>
    %291 = vector.extract_strided_slice %56 {offsets = [0, 52], sizes = [12, 16], strides = [1, 1]} : vector<12x72xf32> to vector<12x16xf32>
    %292 = vector.extract_strided_slice %56 {offsets = [0, 68], sizes = [12, 4], strides = [1, 1]} : vector<12x72xf32> to vector<12x4xf32>
    %293 = arith.truncf %290 : vector<12x16xf32> to vector<12x16xbf16>
    %294 = arith.truncf %291 : vector<12x16xf32> to vector<12x16xbf16>
    %cst_104 = arith.constant dense<0.000000e+00> : vector<12x12xf32>
    %295 = tpu.matmul %293, %294, %cst_104 {dimension_numbers = #tpu.dot_dimension_numbers<[1], [1], [0], [0], [0, 0, 1, 0], [], []>} : vector<12x16xbf16>, vector<12x16xbf16>, vector<12x12xf32> -> vector<12x12xf32>
    %cst_105 = arith.constant 0.000000e+00 : f32
    %296 = vector.broadcast %cst_105 : f32 to vector<12x12xf32>
    %c1_106 = arith.constant 1 : index
    %c0_107 = arith.constant 0 : index
    %297 = memref.load %arg4[%c1_106, %c0_107] : memref<2x49xf32, #tpu.memory_space<smem>>
    %c1_108 = arith.constant 1 : index
    %c16_109 = arith.constant 16 : index
    %298 = memref.load %arg4[%c1_108, %c16_109] : memref<2x49xf32, #tpu.memory_space<smem>>
    %c1_110 = arith.constant 1 : index
    %c32_111 = arith.constant 32 : index
    %299 = memref.load %arg4[%c1_110, %c32_111] : memref<2x49xf32, #tpu.memory_space<smem>>
    %300 = vector.broadcast %297 : f32 to vector<12x12xf32>
    %301 = arith.mulf %36, %300 : vector<12x12xf32>
    %302 = vector.broadcast %298 : f32 to vector<12x12xf32>
    %303 = arith.addf %301, %302 : vector<12x12xf32>
    %cst_112 = arith.constant 0.000000e+00 : f32
    %304 = vector.broadcast %cst_112 : f32 to vector<12x12xf32>
    %305 = arith.maximumf %303, %304 : vector<12x12xf32>
    %306 = vector.broadcast %299 : f32 to vector<12x12xf32>
    %307 = arith.mulf %305, %306 : vector<12x12xf32>
    %308 = arith.addf %296, %307 : vector<12x12xf32>
    %c1_113 = arith.constant 1 : index
    %c1_114 = arith.constant 1 : index
    %309 = memref.load %arg4[%c1_113, %c1_114] : memref<2x49xf32, #tpu.memory_space<smem>>
    %c1_115 = arith.constant 1 : index
    %c17_116 = arith.constant 17 : index
    %310 = memref.load %arg4[%c1_115, %c17_116] : memref<2x49xf32, #tpu.memory_space<smem>>
    %c1_117 = arith.constant 1 : index
    %c33_118 = arith.constant 33 : index
    %311 = memref.load %arg4[%c1_117, %c33_118] : memref<2x49xf32, #tpu.memory_space<smem>>
    %312 = vector.broadcast %309 : f32 to vector<12x12xf32>
    %313 = arith.mulf %36, %312 : vector<12x12xf32>
    %314 = vector.broadcast %310 : f32 to vector<12x12xf32>
    %315 = arith.addf %313, %314 : vector<12x12xf32>
    %cst_119 = arith.constant 0.000000e+00 : f32
    %316 = vector.broadcast %cst_119 : f32 to vector<12x12xf32>
    %317 = arith.maximumf %315, %316 : vector<12x12xf32>
    %318 = vector.broadcast %311 : f32 to vector<12x12xf32>
    %319 = arith.mulf %317, %318 : vector<12x12xf32>
    %320 = arith.addf %308, %319 : vector<12x12xf32>
    %c1_120 = arith.constant 1 : index
    %c2_121 = arith.constant 2 : index
    %321 = memref.load %arg4[%c1_120, %c2_121] : memref<2x49xf32, #tpu.memory_space<smem>>
    %c1_122 = arith.constant 1 : index
    %c18_123 = arith.constant 18 : index
    %322 = memref.load %arg4[%c1_122, %c18_123] : memref<2x49xf32, #tpu.memory_space<smem>>
    %c1_124 = arith.constant 1 : index
    %c34_125 = arith.constant 34 : index
    %323 = memref.load %arg4[%c1_124, %c34_125] : memref<2x49xf32, #tpu.memory_space<smem>>
    %324 = vector.broadcast %321 : f32 to vector<12x12xf32>
    %325 = arith.mulf %36, %324 : vector<12x12xf32>
    %326 = vector.broadcast %322 : f32 to vector<12x12xf32>
    %327 = arith.addf %325, %326 : vector<12x12xf32>
    %cst_126 = arith.constant 0.000000e+00 : f32
    %328 = vector.broadcast %cst_126 : f32 to vector<12x12xf32>
    %329 = arith.maximumf %327, %328 : vector<12x12xf32>
    %330 = vector.broadcast %323 : f32 to vector<12x12xf32>
    %331 = arith.mulf %329, %330 : vector<12x12xf32>
    %332 = arith.addf %320, %331 : vector<12x12xf32>
    %c1_127 = arith.constant 1 : index
    %c3_128 = arith.constant 3 : index
    %333 = memref.load %arg4[%c1_127, %c3_128] : memref<2x49xf32, #tpu.memory_space<smem>>
    %c1_129 = arith.constant 1 : index
    %c19_130 = arith.constant 19 : index
    %334 = memref.load %arg4[%c1_129, %c19_130] : memref<2x49xf32, #tpu.memory_space<smem>>
    %c1_131 = arith.constant 1 : index
    %c35_132 = arith.constant 35 : index
    %335 = memref.load %arg4[%c1_131, %c35_132] : memref<2x49xf32, #tpu.memory_space<smem>>
    %336 = vector.broadcast %333 : f32 to vector<12x12xf32>
    %337 = arith.mulf %36, %336 : vector<12x12xf32>
    %338 = vector.broadcast %334 : f32 to vector<12x12xf32>
    %339 = arith.addf %337, %338 : vector<12x12xf32>
    %cst_133 = arith.constant 0.000000e+00 : f32
    %340 = vector.broadcast %cst_133 : f32 to vector<12x12xf32>
    %341 = arith.maximumf %339, %340 : vector<12x12xf32>
    %342 = vector.broadcast %335 : f32 to vector<12x12xf32>
    %343 = arith.mulf %341, %342 : vector<12x12xf32>
    %344 = arith.addf %332, %343 : vector<12x12xf32>
    %c1_134 = arith.constant 1 : index
    %c4_135 = arith.constant 4 : index
    %345 = memref.load %arg4[%c1_134, %c4_135] : memref<2x49xf32, #tpu.memory_space<smem>>
    %c1_136 = arith.constant 1 : index
    %c20_137 = arith.constant 20 : index
    %346 = memref.load %arg4[%c1_136, %c20_137] : memref<2x49xf32, #tpu.memory_space<smem>>
    %c1_138 = arith.constant 1 : index
    %c36_139 = arith.constant 36 : index
    %347 = memref.load %arg4[%c1_138, %c36_139] : memref<2x49xf32, #tpu.memory_space<smem>>
    %348 = vector.broadcast %345 : f32 to vector<12x12xf32>
    %349 = arith.mulf %36, %348 : vector<12x12xf32>
    %350 = vector.broadcast %346 : f32 to vector<12x12xf32>
    %351 = arith.addf %349, %350 : vector<12x12xf32>
    %cst_140 = arith.constant 0.000000e+00 : f32
    %352 = vector.broadcast %cst_140 : f32 to vector<12x12xf32>
    %353 = arith.maximumf %351, %352 : vector<12x12xf32>
    %354 = vector.broadcast %347 : f32 to vector<12x12xf32>
    %355 = arith.mulf %353, %354 : vector<12x12xf32>
    %356 = arith.addf %344, %355 : vector<12x12xf32>
    %c1_141 = arith.constant 1 : index
    %c5_142 = arith.constant 5 : index
    %357 = memref.load %arg4[%c1_141, %c5_142] : memref<2x49xf32, #tpu.memory_space<smem>>
    %c1_143 = arith.constant 1 : index
    %c21_144 = arith.constant 21 : index
    %358 = memref.load %arg4[%c1_143, %c21_144] : memref<2x49xf32, #tpu.memory_space<smem>>
    %c1_145 = arith.constant 1 : index
    %c37_146 = arith.constant 37 : index
    %359 = memref.load %arg4[%c1_145, %c37_146] : memref<2x49xf32, #tpu.memory_space<smem>>
    %360 = vector.broadcast %357 : f32 to vector<12x12xf32>
    %361 = arith.mulf %36, %360 : vector<12x12xf32>
    %362 = vector.broadcast %358 : f32 to vector<12x12xf32>
    %363 = arith.addf %361, %362 : vector<12x12xf32>
    %cst_147 = arith.constant 0.000000e+00 : f32
    %364 = vector.broadcast %cst_147 : f32 to vector<12x12xf32>
    %365 = arith.maximumf %363, %364 : vector<12x12xf32>
    %366 = vector.broadcast %359 : f32 to vector<12x12xf32>
    %367 = arith.mulf %365, %366 : vector<12x12xf32>
    %368 = arith.addf %356, %367 : vector<12x12xf32>
    %c1_148 = arith.constant 1 : index
    %c6_149 = arith.constant 6 : index
    %369 = memref.load %arg4[%c1_148, %c6_149] : memref<2x49xf32, #tpu.memory_space<smem>>
    %c1_150 = arith.constant 1 : index
    %c22_151 = arith.constant 22 : index
    %370 = memref.load %arg4[%c1_150, %c22_151] : memref<2x49xf32, #tpu.memory_space<smem>>
    %c1_152 = arith.constant 1 : index
    %c38_153 = arith.constant 38 : index
    %371 = memref.load %arg4[%c1_152, %c38_153] : memref<2x49xf32, #tpu.memory_space<smem>>
    %372 = vector.broadcast %369 : f32 to vector<12x12xf32>
    %373 = arith.mulf %36, %372 : vector<12x12xf32>
    %374 = vector.broadcast %370 : f32 to vector<12x12xf32>
    %375 = arith.addf %373, %374 : vector<12x12xf32>
    %cst_154 = arith.constant 0.000000e+00 : f32
    %376 = vector.broadcast %cst_154 : f32 to vector<12x12xf32>
    %377 = arith.maximumf %375, %376 : vector<12x12xf32>
    %378 = vector.broadcast %371 : f32 to vector<12x12xf32>
    %379 = arith.mulf %377, %378 : vector<12x12xf32>
    %380 = arith.addf %368, %379 : vector<12x12xf32>
    %c1_155 = arith.constant 1 : index
    %c7_156 = arith.constant 7 : index
    %381 = memref.load %arg4[%c1_155, %c7_156] : memref<2x49xf32, #tpu.memory_space<smem>>
    %c1_157 = arith.constant 1 : index
    %c23_158 = arith.constant 23 : index
    %382 = memref.load %arg4[%c1_157, %c23_158] : memref<2x49xf32, #tpu.memory_space<smem>>
    %c1_159 = arith.constant 1 : index
    %c39_160 = arith.constant 39 : index
    %383 = memref.load %arg4[%c1_159, %c39_160] : memref<2x49xf32, #tpu.memory_space<smem>>
    %384 = vector.broadcast %381 : f32 to vector<12x12xf32>
    %385 = arith.mulf %36, %384 : vector<12x12xf32>
    %386 = vector.broadcast %382 : f32 to vector<12x12xf32>
    %387 = arith.addf %385, %386 : vector<12x12xf32>
    %cst_161 = arith.constant 0.000000e+00 : f32
    %388 = vector.broadcast %cst_161 : f32 to vector<12x12xf32>
    %389 = arith.maximumf %387, %388 : vector<12x12xf32>
    %390 = vector.broadcast %383 : f32 to vector<12x12xf32>
    %391 = arith.mulf %389, %390 : vector<12x12xf32>
    %392 = arith.addf %380, %391 : vector<12x12xf32>
    %c1_162 = arith.constant 1 : index
    %c8_163 = arith.constant 8 : index
    %393 = memref.load %arg4[%c1_162, %c8_163] : memref<2x49xf32, #tpu.memory_space<smem>>
    %c1_164 = arith.constant 1 : index
    %c24_165 = arith.constant 24 : index
    %394 = memref.load %arg4[%c1_164, %c24_165] : memref<2x49xf32, #tpu.memory_space<smem>>
    %c1_166 = arith.constant 1 : index
    %c40_167 = arith.constant 40 : index
    %395 = memref.load %arg4[%c1_166, %c40_167] : memref<2x49xf32, #tpu.memory_space<smem>>
    %396 = vector.broadcast %393 : f32 to vector<12x12xf32>
    %397 = arith.mulf %36, %396 : vector<12x12xf32>
    %398 = vector.broadcast %394 : f32 to vector<12x12xf32>
    %399 = arith.addf %397, %398 : vector<12x12xf32>
    %cst_168 = arith.constant 0.000000e+00 : f32
    %400 = vector.broadcast %cst_168 : f32 to vector<12x12xf32>
    %401 = arith.maximumf %399, %400 : vector<12x12xf32>
    %402 = vector.broadcast %395 : f32 to vector<12x12xf32>
    %403 = arith.mulf %401, %402 : vector<12x12xf32>
    %404 = arith.addf %392, %403 : vector<12x12xf32>
    %c1_169 = arith.constant 1 : index
    %c9_170 = arith.constant 9 : index
    %405 = memref.load %arg4[%c1_169, %c9_170] : memref<2x49xf32, #tpu.memory_space<smem>>
    %c1_171 = arith.constant 1 : index
    %c25_172 = arith.constant 25 : index
    %406 = memref.load %arg4[%c1_171, %c25_172] : memref<2x49xf32, #tpu.memory_space<smem>>
    %c1_173 = arith.constant 1 : index
    %c41_174 = arith.constant 41 : index
    %407 = memref.load %arg4[%c1_173, %c41_174] : memref<2x49xf32, #tpu.memory_space<smem>>
    %408 = vector.broadcast %405 : f32 to vector<12x12xf32>
    %409 = arith.mulf %36, %408 : vector<12x12xf32>
    %410 = vector.broadcast %406 : f32 to vector<12x12xf32>
    %411 = arith.addf %409, %410 : vector<12x12xf32>
    %cst_175 = arith.constant 0.000000e+00 : f32
    %412 = vector.broadcast %cst_175 : f32 to vector<12x12xf32>
    %413 = arith.maximumf %411, %412 : vector<12x12xf32>
    %414 = vector.broadcast %407 : f32 to vector<12x12xf32>
    %415 = arith.mulf %413, %414 : vector<12x12xf32>
    %416 = arith.addf %404, %415 : vector<12x12xf32>
    %c1_176 = arith.constant 1 : index
    %c10_177 = arith.constant 10 : index
    %417 = memref.load %arg4[%c1_176, %c10_177] : memref<2x49xf32, #tpu.memory_space<smem>>
    %c1_178 = arith.constant 1 : index
    %c26_179 = arith.constant 26 : index
    %418 = memref.load %arg4[%c1_178, %c26_179] : memref<2x49xf32, #tpu.memory_space<smem>>
    %c1_180 = arith.constant 1 : index
    %c42_181 = arith.constant 42 : index
    %419 = memref.load %arg4[%c1_180, %c42_181] : memref<2x49xf32, #tpu.memory_space<smem>>
    %420 = vector.broadcast %417 : f32 to vector<12x12xf32>
    %421 = arith.mulf %36, %420 : vector<12x12xf32>
    %422 = vector.broadcast %418 : f32 to vector<12x12xf32>
    %423 = arith.addf %421, %422 : vector<12x12xf32>
    %cst_182 = arith.constant 0.000000e+00 : f32
    %424 = vector.broadcast %cst_182 : f32 to vector<12x12xf32>
    %425 = arith.maximumf %423, %424 : vector<12x12xf32>
    %426 = vector.broadcast %419 : f32 to vector<12x12xf32>
    %427 = arith.mulf %425, %426 : vector<12x12xf32>
    %428 = arith.addf %416, %427 : vector<12x12xf32>
    %c1_183 = arith.constant 1 : index
    %c11_184 = arith.constant 11 : index
    %429 = memref.load %arg4[%c1_183, %c11_184] : memref<2x49xf32, #tpu.memory_space<smem>>
    %c1_185 = arith.constant 1 : index
    %c27_186 = arith.constant 27 : index
    %430 = memref.load %arg4[%c1_185, %c27_186] : memref<2x49xf32, #tpu.memory_space<smem>>
    %c1_187 = arith.constant 1 : index
    %c43_188 = arith.constant 43 : index
    %431 = memref.load %arg4[%c1_187, %c43_188] : memref<2x49xf32, #tpu.memory_space<smem>>
    %432 = vector.broadcast %429 : f32 to vector<12x12xf32>
    %433 = arith.mulf %36, %432 : vector<12x12xf32>
    %434 = vector.broadcast %430 : f32 to vector<12x12xf32>
    %435 = arith.addf %433, %434 : vector<12x12xf32>
    %cst_189 = arith.constant 0.000000e+00 : f32
    %436 = vector.broadcast %cst_189 : f32 to vector<12x12xf32>
    %437 = arith.maximumf %435, %436 : vector<12x12xf32>
    %438 = vector.broadcast %431 : f32 to vector<12x12xf32>
    %439 = arith.mulf %437, %438 : vector<12x12xf32>
    %440 = arith.addf %428, %439 : vector<12x12xf32>
    %c1_190 = arith.constant 1 : index
    %c12_191 = arith.constant 12 : index
    %441 = memref.load %arg4[%c1_190, %c12_191] : memref<2x49xf32, #tpu.memory_space<smem>>
    %c1_192 = arith.constant 1 : index
    %c28_193 = arith.constant 28 : index
    %442 = memref.load %arg4[%c1_192, %c28_193] : memref<2x49xf32, #tpu.memory_space<smem>>
    %c1_194 = arith.constant 1 : index
    %c44_195 = arith.constant 44 : index
    %443 = memref.load %arg4[%c1_194, %c44_195] : memref<2x49xf32, #tpu.memory_space<smem>>
    %444 = vector.broadcast %441 : f32 to vector<12x12xf32>
    %445 = arith.mulf %36, %444 : vector<12x12xf32>
    %446 = vector.broadcast %442 : f32 to vector<12x12xf32>
    %447 = arith.addf %445, %446 : vector<12x12xf32>
    %cst_196 = arith.constant 0.000000e+00 : f32
    %448 = vector.broadcast %cst_196 : f32 to vector<12x12xf32>
    %449 = arith.maximumf %447, %448 : vector<12x12xf32>
    %450 = vector.broadcast %443 : f32 to vector<12x12xf32>
    %451 = arith.mulf %449, %450 : vector<12x12xf32>
    %452 = arith.addf %440, %451 : vector<12x12xf32>
    %c1_197 = arith.constant 1 : index
    %c13_198 = arith.constant 13 : index
    %453 = memref.load %arg4[%c1_197, %c13_198] : memref<2x49xf32, #tpu.memory_space<smem>>
    %c1_199 = arith.constant 1 : index
    %c29_200 = arith.constant 29 : index
    %454 = memref.load %arg4[%c1_199, %c29_200] : memref<2x49xf32, #tpu.memory_space<smem>>
    %c1_201 = arith.constant 1 : index
    %c45_202 = arith.constant 45 : index
    %455 = memref.load %arg4[%c1_201, %c45_202] : memref<2x49xf32, #tpu.memory_space<smem>>
    %456 = vector.broadcast %453 : f32 to vector<12x12xf32>
    %457 = arith.mulf %36, %456 : vector<12x12xf32>
    %458 = vector.broadcast %454 : f32 to vector<12x12xf32>
    %459 = arith.addf %457, %458 : vector<12x12xf32>
    %cst_203 = arith.constant 0.000000e+00 : f32
    %460 = vector.broadcast %cst_203 : f32 to vector<12x12xf32>
    %461 = arith.maximumf %459, %460 : vector<12x12xf32>
    %462 = vector.broadcast %455 : f32 to vector<12x12xf32>
    %463 = arith.mulf %461, %462 : vector<12x12xf32>
    %464 = arith.addf %452, %463 : vector<12x12xf32>
    %c1_204 = arith.constant 1 : index
    %c14_205 = arith.constant 14 : index
    %465 = memref.load %arg4[%c1_204, %c14_205] : memref<2x49xf32, #tpu.memory_space<smem>>
    %c1_206 = arith.constant 1 : index
    %c30_207 = arith.constant 30 : index
    %466 = memref.load %arg4[%c1_206, %c30_207] : memref<2x49xf32, #tpu.memory_space<smem>>
    %c1_208 = arith.constant 1 : index
    %c46_209 = arith.constant 46 : index
    %467 = memref.load %arg4[%c1_208, %c46_209] : memref<2x49xf32, #tpu.memory_space<smem>>
    %468 = vector.broadcast %465 : f32 to vector<12x12xf32>
    %469 = arith.mulf %36, %468 : vector<12x12xf32>
    %470 = vector.broadcast %466 : f32 to vector<12x12xf32>
    %471 = arith.addf %469, %470 : vector<12x12xf32>
    %cst_210 = arith.constant 0.000000e+00 : f32
    %472 = vector.broadcast %cst_210 : f32 to vector<12x12xf32>
    %473 = arith.maximumf %471, %472 : vector<12x12xf32>
    %474 = vector.broadcast %467 : f32 to vector<12x12xf32>
    %475 = arith.mulf %473, %474 : vector<12x12xf32>
    %476 = arith.addf %464, %475 : vector<12x12xf32>
    %c1_211 = arith.constant 1 : index
    %c15_212 = arith.constant 15 : index
    %477 = memref.load %arg4[%c1_211, %c15_212] : memref<2x49xf32, #tpu.memory_space<smem>>
    %c1_213 = arith.constant 1 : index
    %c31_214 = arith.constant 31 : index
    %478 = memref.load %arg4[%c1_213, %c31_214] : memref<2x49xf32, #tpu.memory_space<smem>>
    %c1_215 = arith.constant 1 : index
    %c47_216 = arith.constant 47 : index
    %479 = memref.load %arg4[%c1_215, %c47_216] : memref<2x49xf32, #tpu.memory_space<smem>>
    %480 = vector.broadcast %477 : f32 to vector<12x12xf32>
    %481 = arith.mulf %36, %480 : vector<12x12xf32>
    %482 = vector.broadcast %478 : f32 to vector<12x12xf32>
    %483 = arith.addf %481, %482 : vector<12x12xf32>
    %cst_217 = arith.constant 0.000000e+00 : f32
    %484 = vector.broadcast %cst_217 : f32 to vector<12x12xf32>
    %485 = arith.maximumf %483, %484 : vector<12x12xf32>
    %486 = vector.broadcast %479 : f32 to vector<12x12xf32>
    %487 = arith.mulf %485, %486 : vector<12x12xf32>
    %488 = arith.addf %476, %487 : vector<12x12xf32>
    %489 = arith.addf %295, %488 : vector<12x12xf32>
    %c1_218 = arith.constant 1 : index
    %c48_219 = arith.constant 48 : index
    %490 = memref.load %arg4[%c1_218, %c48_219] : memref<2x49xf32, #tpu.memory_space<smem>>
    %491 = vector.broadcast %490 : f32 to vector<12x12xf32>
    %492 = arith.addf %489, %491 : vector<12x12xf32>
    %cst_220 = arith.constant -1.000000e+30 : f32
    %493 = vector.broadcast %cst_220 : f32 to vector<12x12xf32>
    %494 = arith.select %31, %492, %493 : vector<12x12xi1>, vector<12x12xf32>
    %cst_221 = arith.constant dense<0xFF800000> : vector<12xf32>
    %495 = vector.multi_reduction <maximumf>, %494, %cst_221 [1] : vector<12x12xf32> to vector<12xf32>
    %496 = vector.shape_cast %495 : vector<12xf32> to vector<12x1xf32>
    %497 = vector.broadcast %496 : vector<12x1xf32> to vector<12x12xf32>
    %498 = arith.subf %494, %497 : vector<12x12xf32>
    %499 = math.exp %498 : vector<12x12xf32>
    %500 = arith.mulf %499, %4 : vector<12x12xf32>
    %cst_222 = arith.constant dense<0.000000e+00> : vector<12xf32>
    %501 = vector.multi_reduction <add>, %500, %cst_222 [1] : vector<12x12xf32> to vector<12xf32>
    %502 = vector.shape_cast %501 : vector<12xf32> to vector<12x1xf32>
    %cst_223 = arith.constant 9.99999968E-21 : f32
    %503 = vector.broadcast %cst_223 : f32 to vector<12x1xf32>
    %504 = arith.maximumf %502, %503 : vector<12x1xf32>
    %505 = tpu.reciprocal %504 {approx = true} : vector<12x1xf32> -> vector<12x1xf32>
    %506 = vector.broadcast %505 : vector<12x1xf32> to vector<12x12xf32>
    %507 = arith.mulf %500, %506 : vector<12x12xf32>
    %c24_224 = arith.constant 24 : index
    %c4_225 = arith.constant 4 : index
    %508 = vector.load %arg3[%c24_224, %c4_225] : memref<68x72xf32, #tpu.memory_space<vmem>>, vector<1x4xf32>
    %c32_226 = arith.constant 32 : index
    %c4_227 = arith.constant 4 : index
    %509 = vector.load %arg3[%c32_226, %c4_227] : memref<68x72xf32, #tpu.memory_space<vmem>>, vector<36x4xf32>
    %510 = tpu.concatenate %507, %507, %507 in 1 : vector<12x12xf32>, vector<12x12xf32>, vector<12x12xf32> -> vector<12x36xf32>
    %511 = arith.mulf %510, %47 : vector<12x36xf32>
    %512 = tpu.concatenate %507, %511 in 1 : vector<12x12xf32>, vector<12x36xf32> -> vector<12x48xf32>
    %513 = vector.broadcast %508 : vector<1x4xf32> to vector<12x4xf32>
    %514 = arith.addf %292, %513 : vector<12x4xf32>
    %515 = tpu.concatenate %514, %509 in 0 : vector<12x4xf32>, vector<36x4xf32> -> vector<48x4xf32>
    %516 = arith.truncf %512 : vector<12x48xf32> to vector<12x48xbf16>
    %517 = arith.truncf %515 : vector<48x4xf32> to vector<48x4xbf16>
    %cst_228 = arith.constant dense<0.000000e+00> : vector<12x4xf32>
    %518 = tpu.matmul %516, %517, %cst_228 {dimension_numbers = #tpu.dot_dimension_numbers<[1], [0], [0], [1], [0, 0, 1, 1], [], []>} : vector<12x48xbf16>, vector<48x4xbf16>, vector<12x4xf32> -> vector<12x4xf32>
    %519 = tpu.concatenate %287, %518 in 1 : vector<12x4xf32>, vector<12x4xf32> -> vector<12x8xf32>
    %520 = arith.truncf %5 : vector<2x12xf32> to vector<2x12xbf16>
    %521 = arith.truncf %519 : vector<12x8xf32> to vector<12x8xbf16>
    %cst_229 = arith.constant dense<0.000000e+00> : vector<2x8xf32>
    %522 = tpu.matmul %520, %521, %cst_229 {dimension_numbers = #tpu.dot_dimension_numbers<[1], [0], [0], [1], [0, 0, 1, 1], [], []>} : vector<2x12xbf16>, vector<12x8xbf16>, vector<2x8xf32> -> vector<2x8xf32>
    %523 = arith.truncf %522 : vector<2x8xf32> to vector<2x8xbf16>
    %524 = arith.truncf %3 : vector<8x8xf32> to vector<8x8xbf16>
    %cst_230 = arith.constant dense<0.000000e+00> : vector<2x8xf32>
    %525 = tpu.matmul %523, %524, %cst_230 {dimension_numbers = #tpu.dot_dimension_numbers<[1], [0], [0], [1], [0, 0, 1, 1], [], []>} : vector<2x8xbf16>, vector<8x8xbf16>, vector<2x8xf32> -> vector<2x8xf32>
    %c0_231 = arith.constant 0 : index
    %c0_232 = arith.constant 0 : index
    %526 = vector.load %arg5[%c0_231, %c0_232] : memref<2x8xf32, #tpu.memory_space<vmem>>, vector<2x8xf32>
    tpu.vector_store %arg5[%c0_231, %c0_232], %525 {strides = array<i32>} : memref<2x8xf32, #tpu.memory_space<vmem>>, vector<2x8xf32>,
    return
  }
}

</mosaic_0001>

<llo_original>
// kernel: forward.1
$region0: #{forward.1}
  #allocation0 [shape = 'u32[]', space=smem, size = 0x4, offset = 0x4, fixed_abs, tag = 'smem constant byte address 0x4 - core index']
  #allocation1 [shape = 'u32[144,128]{1,0:T(1,128)}', space=vmem, size = 0x12000, scoped, tag = 'internal scratch']
  %s0 = inlined_call_operand.vmem [shape: f32[12,7], index: 0, kind: input, shape index: {}]
  %s1 = inlined_call_operand.vmem [shape: f32[12,3], index: 1, kind: input, shape index: {}]
  %s2 = inlined_call_operand.vmem [shape: f32[20,12], index: 2, kind: input, shape index: {}]
  %s3 = inlined_call_operand.vmem [shape: f32[68,72], index: 3, kind: input, shape index: {}]
  %s4 = inlined_call_operand.vmem [shape: f32[2,49], index: 4, kind: input, shape index: {}]
  %s5 = inlined_call_operand.hbm [shape: f32[2,8], index: 5, kind: output, shape index: {}]
  %s6 = sld [smem:[#allocation0]]
  $region34: #{forward.1} parent=0
    _
  %s8 = ssub.s32 1, %s6
  %s9 = scalar_select 0, %s8, %s6
  $region1: #{forward.1} parent=0
    #allocation2 [shape = 'u8[1024]{0}', space=smem, size = 0x400, scoped, tag = 'input window, operand 4, single buffered']
    #allocation3 [shape = 's32[1]{0}', space=sflag, size = 0x4, scoped, tag = 'scoped memory for forward.1']
    #allocation4 [shape = 's32[1]{0}', space=sflag, size = 0x4, scoped, tag = 'scoped memory for forward.1']
    #allocation5 [shape = 'u8[1024]{0}', space=vmem, size = 0x400, scoped, tag = 'output window, operand 0, single buffered']
    %10 = vsyncpa [#allocation4], 0
    %11 = vsyncpa [#allocation3], 0
    // Predicated region
    $region2: #{forward.1} parent=1 // pred_check
      _
    $region3: #{forward.1} parent=1 // pred_check_branch
      %13 = sbr.rel (0) target = $region5
    $region4: #{forward.1} parent=1 // pred_region
      _
    $region5: #{forward.1} parent=1 // pred_fallthru
      _
    // Predicated region
    $region6: #{forward.1} parent=1 // pred_check
      _
    $region7: #{forward.1} parent=1 // pred_check_branch
      %15 = sbr.rel (0) target = $region9
    $region8: #{forward.1} parent=1 // pred_region
      _
    $region9: #{forward.1} parent=1 // pred_fallthru
      _
    // Predicated region
    $region10: #{forward.1} parent=1 // pred_check
      _
    $region11: #{forward.1} parent=1 // pred_check_branch
      %17 = sbr.rel (0) target = $region13
    $region12: #{forward.1} parent=1 // pred_region
      _
    $region13: #{forward.1} parent=1 // pred_fallthru
      _
    // Predicated region
    $region14: #{forward.1} parent=1 // pred_check
      _
    $region15: #{forward.1} parent=1 // pred_check_branch
      %19 = sbr.rel (0) target = $region17
    $region16: #{forward.1} parent=1 // pred_region
      _
    $region17: #{forward.1} parent=1 // pred_fallthru
      _
    // Predicated region
    $region18: #{forward.1} parent=1 // pred_check
      _
    $region19: #{forward.1} parent=1 // pred_check_branch
      %21 = sbr.rel (0) target = $region21
    $region20: #{forward.1} parent=1 // pred_region
      %s23 = ssub.s32 32, 32
      %24 = vsyncadd [#allocation4], %s23
      %s26 = sshll.u32 %s4, 4
      %s27 = int_to_ptr.vmem [resolvable:$true] %s26
      %29 = dma.vmem_to_smem %s27, 32, [#allocation2], [#allocation4]
    $region21: #{forward.1} parent=1 // pred_fallthru
      _
    // Predicated region
    $region22: #{forward.1} parent=1 // pred_check
      _
    $region23: #{forward.1} parent=1 // pred_check_branch
      %31 = sbr.rel (0) target = $region25
    $region24: #{forward.1} parent=1 // pred_region
      %32 = dma.done [#allocation4], 32
    $region25: #{forward.1} parent=1 // pred_fallthru
      _
    %33 = sfence
    %v35 = vld [vmem:[%s3] sm:$0x7f]
    %v36 = vld [vmem:[%s3 + $0x7] sm:$0x1]
    %v37 = vld [vmem:[%s3 + $0x8] sm:$0xff]
    %v38 = vld [vmem:[%s3 + $0x10] sm:$0xff]
    %v39 = vld [vmem:[%s2 + $0x8] sm:$0xff]
    %v40 = vld [vmem:[%s2 + $0x10] sm:$0xf]
    %v41 = vld [vmem:[%s2 + $0x3] sm:$0x3]
    %v42 = vld [vmem:[%s2] sm:$0x7]
    %v43 = vld [vmem:[%s1] sm:$0xff]
    %v44 = vld [vmem:[%s1 + $0x8] sm:$0xf]
    %46 = vset.pattern.permute.xlu0 0
    %47 = vperm.xlu0 %46, %v43
    %v48 = vpop.permute.xlu0 %47
    %51 = vset.pattern.permute.xlu0 0
    %52 = vperm.xlu0 %51, %v44
    %v53 = vpop.permute.xlu0 %52
    %v55 = vlaneseq
    %v56 = vshrl.u32 %v55, 7
    %v57 = vsub.s32 0, %v56
    %v58 = vrot.slane %v42, %v57
    %v59 = vsub.f32 %v48, %v58
    %v60 = vsub.f32 %v53, %v58
    %v61 = vmul.f32 %v59, %v59
    %v62 = vmul.f32 %v60, %v60
    %v63 = vadd.f32 %v61, 0.0
    %v64 = vadd.f32 %v62, 0.0
    %65 = vset.pattern.permute.xlu0 1
    %66 = vperm.xlu0 %65, %v43
    %v67 = vpop.permute.xlu0 %66
    %69 = vset.pattern.permute.xlu0 1
    %70 = vperm.xlu0 %69, %v44
    %v71 = vpop.permute.xlu0 %70
    %v73 = vlaneseq
    %v74 = vshrl.u32 %v73, 7
    %v75 = vsub.s32 1, %v74
    %v76 = vrot.slane %v42, %v75
    %v77 = vsub.f32 %v67, %v76
    %v78 = vsub.f32 %v71, %v76
    %v79 = vmul.f32 %v77, %v77
    %v80 = vmul.f32 %v78, %v78
    %v81 = vadd.f32 %v63, %v79
    %v82 = vadd.f32 %v64, %v80
    %83 = vset.pattern.permute.xlu0 2
    %84 = vperm.xlu0 %83, %v43
    %v85 = vpop.permute.xlu0 %84
    %87 = vset.pattern.permute.xlu0 2
    %88 = vperm.xlu0 %87, %v44
    %v89 = vpop.permute.xlu0 %88
    %v91 = vlaneseq
    %v92 = vshrl.u32 %v91, 7
    %v93 = vsub.s32 2, %v92
    %v94 = vrot.slane %v42, %v93
    %v95 = vsub.f32 %v85, %v94
    %v96 = vsub.f32 %v89, %v94
    %v97 = vmul.f32 %v95, %v95
    %v98 = vmul.f32 %v96, %v96
    %v99 = vadd.f32 %v81, %v97
    %v100 = vadd.f32 %v82, %v98
    %vm101 = vcmp.gt.f32.partialorder %v39, 0.0
    %vm102 = vcmp.gt.f32.partialorder %v40, 0.0
    %v103 = vsel %vm101, %v99, 1.0
    %v104 = vsel %vm102, %v100, 1.0
    %v105 = vrsqrt.pop %v103
    %v106 = vmul.f32 %v103, %v105
    %vm107 = vcmp.eq.f32.partialorder %v103, inf
    %v108 = vsel %vm107, %v103, %v106
    %vm109 = vcmp.eq.f32.partialorder %v103, 0.0
    %v110 = vand.u32 %v103, 2147483648
    %v111 = vsel %vm109, %v110, %v108
    %v112 = vrsqrt.pop %v104
    %v113 = vmul.f32 %v104, %v112
    %vm114 = vcmp.eq.f32.partialorder %v104, inf
    %v115 = vsel %vm114, %v104, %v113
    %vm116 = vcmp.eq.f32.partialorder %v104, 0.0
    %v117 = vand.u32 %v104, 2147483648
    %v118 = vsel %vm116, %v117, %v115
    %v119 = vrcp.pop %v103
    %v120 = vmul.f32 1.0, %v119
    %v121 = vrcp.pop %v104
    %v122 = vmul.f32 1.0, %v121
    %v123 = vrsqrt.pop %v103
    %v124 = vrsqrt.pop %v104
    %v125 = vmul.f32 %v59, 1.7320508
    %v126 = vmul.f32 %v60, 1.7320508
    %v127 = vmul.f32 %v125, %v123
    %v128 = vmul.f32 %v126, %v124
    %v129 = vmul.f32 %v77, 1.7320508
    %v130 = vmul.f32 %v78, 1.7320508
    %v131 = vmul.f32 %v129, %v123
    %v132 = vmul.f32 %v130, %v124
    %v133 = vmul.f32 %v95, 1.7320508
    %v134 = vmul.f32 %v96, 1.7320508
    %v135 = vmul.f32 %v133, %v123
    %v136 = vmul.f32 %v134, %v124
    %139 = vrot.lane.b32.xlu0 %v131, 12
    %v140 = vpop.permute.xlu0 %139
    %141 = vrot.lane.b32.xlu0 %v132, 12
    %v142 = vpop.permute.xlu0 %141
    %147 = vrot.lane.b32.xlu0 %v135, 24
    %v148 = vpop.permute.xlu0 %147
    %149 = vrot.lane.b32.xlu0 %v136, 24
    %v150 = vpop.permute.xlu0 %149
    %vm153 = vcmask 97280
    %v154 = vsel %vm153, %v127, %v140
    %v155 = vsel %vm153, %v128, %v142
    %vm156 = vcmask 195584
    %v157 = vsel %vm156, %v154, %v148
    %v158 = vsel %vm156, %v155, %v150
    %v159 = vld [vmem:[%s0] sm:$0xff]
    %v160 = vld [vmem:[%s0 + $0x8] sm:$0xf]
    %v161 = vpack.c.bf16 %v160, %v159
    %v162 = vpack.c.bf16 %v35, %v35
    %v163 = vlaneseq
    %v164 = vshrl.u32 %v163, 7
    %v165 = vsub.s32 0, %v164
    %v166 = vrot.slane %v36, %v165
    %vm167 = vcmask 56320
    %v169 = vsel %vm167, %v161, 0
    %vm171 = vcmask 1042432
    %vm172 = vcmask 1043456
    %v173 = vsel %vm171, 4294967295, 65535
    %v174 = vsel %vm172, %v173, 0
    %v176 = vand.u32 %v162, %v174
    %178 = vmatprep.subr.bf16.mxu0 0
    %179 = vmatpush1.bf16.msra.mxu0 %v176
    %180 = vmatprep.subr.bf16.mxu0 0
    %181 = vmatpush1.bf16.msra.mxu0 0
    %182 = vmatprep.subr.bf16.mxu0 0
    %183 = vmatpush1.bf16.msra.mxu0 0
    %184 = vmatprep.subr.bf16.mxu0 0
    %185 = vmatpush1.bf16.msra.mxu0 0
    %186 = vmatprep.subr.bf16.mxu0 0
    %187 = vmatpush1.bf16.msra.mxu0 0
    %188 = vmatprep.subr.bf16.mxu0 0
    %189 = vmatpush1.bf16.msra.mxu0 0
    %190 = vmatprep.subr.bf16.mxu0 0
    %191 = vmatpush1.bf16.msra.mxu0 0
    %192 = vmatprep.subr.bf16.mxu0 0
    %193 = vmatpush1.bf16.msra.mxu0 0
    %194 = vmatprep.subr.bf16.mxu0 0
    %195 = vmatpush1.bf16.msra.mxu0 0
    %196 = vmatprep.subr.bf16.mxu0 0
    %197 = vmatpush1.bf16.msra.mxu0 0
    %198 = vmatprep.subr.bf16.mxu0 0
    %199 = vmatpush1.bf16.msra.mxu0 0
    %200 = vmatprep.subr.bf16.mxu0 0
    %201 = vmatpush1.bf16.msra.mxu0 0
    %202 = vmatprep.subr.bf16.mxu0 0
    %203 = vmatpush1.bf16.msra.mxu0 0
    %204 = vmatprep.subr.bf16.mxu0 0
    %205 = vmatpush1.bf16.msra.mxu0 0
    %206 = vmatprep.subr.bf16.mxu0 0
    %207 = vmatpush1.bf16.msra.mxu0 0
    %208 = vmatprep.subr.bf16.mxu0 0
    %209 = vmatpush1.bf16.msra.mxu0 0
    %210 = vmatprep.mubr.bf16.mxu0 0
    %211 = vmatmul.mubr.bf16.gmra.mrb[0].mxu0 %v169
    %v212 = vpop.f32.mrb[0].mxu0
    %v213 = vadd.f32 %v166, %v212
    %v214 = vpop.f32.mrb[0].mxu0
    %v215 = vpop.f32.mrb[0].mxu0
    %v216 = vadd.f32 %v166, %v215
    %v217 = vpop.f32.mrb[0].mxu0
    %218 = vdwg.mxu0
    %v219 = vpack.c.bf16 %v216, %v213
    %v220 = vpack.c.bf16 %v37, %v37
    %vm221 = vcmask 64512
    %v223 = vsel %vm221, %v219, 0
    %v226 = vsel %vm172, %v220, 0
    %228 = vmatprep.subr.bf16.mxu0 0
    %229 = vmatpush1.bf16.msra.mxu0 %v226
    %230 = vmatprep.subr.bf16.mxu0 0
    %231 = vmatpush1.bf16.msra.mxu0 0
    %232 = vmatprep.subr.bf16.mxu0 0
    %233 = vmatpush1.bf16.msra.mxu0 0
    %234 = vmatprep.subr.bf16.mxu0 0
    %235 = vmatpush1.bf16.msra.mxu0 0
    %236 = vmatprep.subr.bf16.mxu0 0
    %237 = vmatpush1.bf16.msra.mxu0 0
    %238 = vmatprep.subr.bf16.mxu0 0
    %239 = vmatpush1.bf16.msra.mxu0 0
    %240 = vmatprep.subr.bf16.mxu0 0
    %241 = vmatpush1.bf16.msra.mxu0 0
    %242 = vmatprep.subr.bf16.mxu0 0
    %243 = vmatpush1.bf16.msra.mxu0 0
    %244 = vmatprep.subr.bf16.mxu0 0
    %245 = vmatpush1.bf16.msra.mxu0 0
    %246 = vmatprep.subr.bf16.mxu0 0
    %247 = vmatpush1.bf16.msra.mxu0 0
    %248 = vmatprep.subr.bf16.mxu0 0
    %249 = vmatpush1.bf16.msra.mxu0 0
    %250 = vmatprep.subr.bf16.mxu0 0
    %251 = vmatpush1.bf16.msra.mxu0 0
    %252 = vmatprep.subr.bf16.mxu0 0
    %253 = vmatpush1.bf16.msra.mxu0 0
    %254 = vmatprep.subr.bf16.mxu0 0
    %255 = vmatpush1.bf16.msra.mxu0 0
    %256 = vmatprep.subr.bf16.mxu0 0
    %257 = vmatpush1.bf16.msra.mxu0 0
    %258 = vmatprep.subr.bf16.mxu0 0
    %259 = vmatpush1.bf16.msra.mxu0 0
    %260 = vmatprep.mubr.bf16.mxu0 0
    %261 = vmatmul.mubr.bf16.gmra.mrb[0].mxu0 %v223
    %v262 = vpop.f32.mrb[0].mxu0
    %v263 = vadd.f32 0.0, %v262
    %v264 = vpop.f32.mrb[0].mxu0
    %v265 = vpop.f32.mrb[0].mxu0
    %v266 = vadd.f32 0.0, %v265
    %v267 = vpop.f32.mrb[0].mxu0
    %268 = vdwg.mxu0
    %v269 = vmul.f32 %v263, 0.25
    %v270 = vmul.f32 %v266, 0.25
    %v271 = vpack.c.bf16 %v270, %v269
    %v272 = vpack.c.bf16 %v266, %v263
    %s273 = sld [smem:[#allocation2]]
    %s274 = sld [smem:[#allocation2 + $0x10]]
    %s275 = sld [smem:[#allocation2 + $0x20]]
    %v276 = vstv %s273
    %v277 = vmul.f32 %v111, %v276
    %v278 = vmul.f32 %v118, %v276
    %v279 = vstv %s274
    %v280 = vadd.f32 %v277, %v279
    %v281 = vadd.f32 %v278, %v279
    %v282 = vmax.f32 %v280, 0.0
    %v283 = vmax.f32 %v281, 0.0
    %v284 = vstv %s275
    %v285 = vmul.f32 %v282, %v284
    %v286 = vmul.f32 %v283, %v284
    %v287 = vadd.f32 %v285, 0.0
    %v288 = vadd.f32 %v286, 0.0
    %s289 = sld [smem:[#allocation2 + $0x1]]
    %s290 = sld [smem:[#allocation2 + $0x11]]
    %s291 = sld [smem:[#allocation2 + $0x21]]
    %v292 = vstv %s289
    %v293 = vmul.f32 %v111, %v292
    %v294 = vmul.f32 %v118, %v292
    %v295 = vstv %s290
    %v296 = vadd.f32 %v293, %v295
    %v297 = vadd.f32 %v294, %v295
    %v298 = vmax.f32 %v296, 0.0
    %v299 = vmax.f32 %v297, 0.0
    %v300 = vstv %s291
    %v301 = vmul.f32 %v298, %v300
    %v302 = vmul.f32 %v299, %v300
    %v303 = vadd.f32 %v287, %v301
    %v304 = vadd.f32 %v288, %v302
    %s305 = sld [smem:[#allocation2 + $0x2]]
    %s306 = sld [smem:[#allocation2 + $0x12]]
    %s307 = sld [smem:[#allocation2 + $0x22]]
    %v308 = vstv %s305
    %v309 = vmul.f32 %v111, %v308
    %v310 = vmul.f32 %v118, %v308
    %v311 = vstv %s306
    %v312 = vadd.f32 %v309, %v311
    %v313 = vadd.f32 %v310, %v311
    %v314 = vmax.f32 %v312, 0.0
    %v315 = vmax.f32 %v313, 0.0
    %v316 = vstv %s307
    %v317 = vmul.f32 %v314, %v316
    %v318 = vmul.f32 %v315, %v316
    %v319 = vadd.f32 %v303, %v317
    %v320 = vadd.f32 %v304, %v318
    %s321 = sld [smem:[#allocation2 + $0x3]]
    %s322 = sld [smem:[#allocation2 + $0x13]]
    %s323 = sld [smem:[#allocation2 + $0x23]]
    %v324 = vstv %s321
    %v325 = vmul.f32 %v111, %v324
    %v326 = vmul.f32 %v118, %v324
    %v327 = vstv %s322
    %v328 = vadd.f32 %v325, %v327
    %v329 = vadd.f32 %v326, %v327
    %v330 = vmax.f32 %v328, 0.0
    %v331 = vmax.f32 %v329, 0.0
    %v332 = vstv %s323
    %v333 = vmul.f32 %v330, %v332
    %v334 = vmul.f32 %v331, %v332
    %v335 = vadd.f32 %v319, %v333
    %v336 = vadd.f32 %v320, %v334
    %s337 = sld [smem:[#allocation2 + $0x4]]
    %s338 = sld [smem:[#allocation2 + $0x14]]
    %s339 = sld [smem:[#allocation2 + $0x24]]
    %v340 = vstv %s337
    %v341 = vmul.f32 %v111, %v340
    %v342 = vmul.f32 %v118, %v340
    %v343 = vstv %s338
    %v344 = vadd.f32 %v341, %v343
    %v345 = vadd.f32 %v342, %v343
    %v346 = vmax.f32 %v344, 0.0
    %v347 = vmax.f32 %v345, 0.0
    %v348 = vstv %s339
    %v349 = vmul.f32 %v346, %v348
    %v350 = vmul.f32 %v347, %v348
    %v351 = vadd.f32 %v335, %v349
    %v352 = vadd.f32 %v336, %v350
    %s353 = sld [smem:[#allocation2 + $0x5]]
    %s354 = sld [smem:[#allocation2 + $0x15]]
    %s355 = sld [smem:[#allocation2 + $0x25]]
    %v356 = vstv %s353
    %v357 = vmul.f32 %v111, %v356
    %v358 = vmul.f32 %v118, %v356
    %v359 = vstv %s354
    %v360 = vadd.f32 %v357, %v359
    %v361 = vadd.f32 %v358, %v359
    %v362 = vmax.f32 %v360, 0.0
    %v363 = vmax.f32 %v361, 0.0
    %v364 = vstv %s355
    %v365 = vmul.f32 %v362, %v364
    %v366 = vmul.f32 %v363, %v364
    %v367 = vadd.f32 %v351, %v365
    %v368 = vadd.f32 %v352, %v366
    %s369 = sld [smem:[#allocation2 + $0x6]]
    %s370 = sld [smem:[#allocation2 + $0x16]]
    %s371 = sld [smem:[#allocation2 + $0x26]]
    %v372 = vstv %s369
    %v373 = vmul.f32 %v111, %v372
    %v374 = vmul.f32 %v118, %v372
    %v375 = vstv %s370
    %v376 = vadd.f32 %v373, %v375
    %v377 = vadd.f32 %v374, %v375
    %v378 = vmax.f32 %v376, 0.0
    %v379 = vmax.f32 %v377, 0.0
    %v380 = vstv %s371
    %v381 = vmul.f32 %v378, %v380
    %v382 = vmul.f32 %v379, %v380
    %v383 = vadd.f32 %v367, %v381
    %v384 = vadd.f32 %v368, %v382
    %s385 = sld [smem:[#allocation2 + $0x7]]
    %s386 = sld [smem:[#allocation2 + $0x17]]
    %s387 = sld [smem:[#allocation2 + $0x27]]
    %v388 = vstv %s385
    %v389 = vmul.f32 %v111, %v388
    %v390 = vmul.f32 %v118, %v388
    %v391 = vstv %s386
    %v392 = vadd.f32 %v389, %v391
    %v393 = vadd.f32 %v390, %v391
    %v394 = vmax.f32 %v392, 0.0
    %v395 = vmax.f32 %v393, 0.0
    %v396 = vstv %s387
    %v397 = vmul.f32 %v394, %v396
    %v398 = vmul.f32 %v395, %v396
    %v399 = vadd.f32 %v383, %v397
    %v400 = vadd.f32 %v384, %v398
    %s401 = sld [smem:[#allocation2 + $0x8]]
    %s402 = sld [smem:[#allocation2 + $0x18]]
    %s403 = sld [smem:[#allocation2 + $0x28]]
    %v404 = vstv %s401
    %v405 = vmul.f32 %v111, %v404
    %v406 = vmul.f32 %v118, %v404
    %v407 = vstv %s402
    %v408 = vadd.f32 %v405, %v407
    %v409 = vadd.f32 %v406, %v407
    %v410 = vmax.f32 %v408, 0.0
    %v411 = vmax.f32 %v409, 0.0
    %v412 = vstv %s403
    %v413 = vmul.f32 %v410, %v412
    %v414 = vmul.f32 %v411, %v412
    %v415 = vadd.f32 %v399, %v413
    %v416 = vadd.f32 %v400, %v414
    %s417 = sld [smem:[#allocation2 + $0x9]]
    %s418 = sld [smem:[#allocation2 + $0x19]]
    %s419 = sld [smem:[#allocation2 + $0x29]]
    %v420 = vstv %s417
    %v421 = vmul.f32 %v111, %v420
    %v422 = vmul.f32 %v118, %v420
    %v423 = vstv %s418
    %v424 = vadd.f32 %v421, %v423
    %v425 = vadd.f32 %v422, %v423
    %v426 = vmax.f32 %v424, 0.0
    %v427 = vmax.f32 %v425, 0.0
    %v428 = vstv %s419
    %v429 = vmul.f32 %v426, %v428
    %v430 = vmul.f32 %v427, %v428
    %v431 = vadd.f32 %v415, %v429
    %v432 = vadd.f32 %v416, %v430
    %s433 = sld [smem:[#allocation2 + $0xa]]
    %s434 = sld [smem:[#allocation2 + $0x1a]]
    %s435 = sld [smem:[#allocation2 + $0x2a]]
    %v436 = vstv %s433
    %v437 = vmul.f32 %v111, %v436
    %v438 = vmul.f32 %v118, %v436
    %v439 = vstv %s434
    %v440 = vadd.f32 %v437, %v439
    %v441 = vadd.f32 %v438, %v439
    %v442 = vmax.f32 %v440, 0.0
    %v443 = vmax.f32 %v441, 0.0
    %v444 = vstv %s435
    %v445 = vmul.f32 %v442, %v444
    %v446 = vmul.f32 %v443, %v444
    %v447 = vadd.f32 %v431, %v445
    %v448 = vadd.f32 %v432, %v446
    %s449 = sld [smem:[#allocation2 + $0xb]]
    %s450 = sld [smem:[#allocation2 + $0x1b]]
    %s451 = sld [smem:[#allocation2 + $0x2b]]
    %v452 = vstv %s449
    %v453 = vmul.f32 %v111, %v452
    %v454 = vmul.f32 %v118, %v452
    %v455 = vstv %s450
    %v456 = vadd.f32 %v453, %v455
    %v457 = vadd.f32 %v454, %v455
    %v458 = vmax.f32 %v456, 0.0
    %v459 = vmax.f32 %v457, 0.0
    %v460 = vstv %s451
    %v461 = vmul.f32 %v458, %v460
    %v462 = vmul.f32 %v459, %v460
    %v463 = vadd.f32 %v447, %v461
    %v464 = vadd.f32 %v448, %v462
    %s465 = sld [smem:[#allocation2 + $0xc]]
    %s466 = sld [smem:[#allocation2 + $0x1c]]
    %s467 = sld [smem:[#allocation2 + $0x2c]]
    %v468 = vstv %s465
    %v469 = vmul.f32 %v111, %v468
    %v470 = vmul.f32 %v118, %v468
    %v471 = vstv %s466
    %v472 = vadd.f32 %v469, %v471
    %v473 = vadd.f32 %v470, %v471
    %v474 = vmax.f32 %v472, 0.0
    %v475 = vmax.f32 %v473, 0.0
    %v476 = vstv %s467
    %v477 = vmul.f32 %v474, %v476
    %v478 = vmul.f32 %v475, %v476
    %v479 = vadd.f32 %v463, %v477
    %v480 = vadd.f32 %v464, %v478
    %s481 = sld [smem:[#allocation2 + $0xd]]
    %s482 = sld [smem:[#allocation2 + $0x1d]]
    %s483 = sld [smem:[#allocation2 + $0x2d]]
    %v484 = vstv %s481
    %v485 = vmul.f32 %v111, %v484
    %v486 = vmul.f32 %v118, %v484
    %v487 = vstv %s482
    %v488 = vadd.f32 %v485, %v487
    %v489 = vadd.f32 %v486, %v487
    %v490 = vmax.f32 %v488, 0.0
    %v491 = vmax.f32 %v489, 0.0
    %v492 = vstv %s483
    %v493 = vmul.f32 %v490, %v492
    %v494 = vmul.f32 %v491, %v492
    %v495 = vadd.f32 %v479, %v493
    %v496 = vadd.f32 %v480, %v494
    %s497 = sld [smem:[#allocation2 + $0xe]]
    %s498 = sld [smem:[#allocation2 + $0x1e]]
    %s499 = sld [smem:[#allocation2 + $0x2e]]
    %v500 = vstv %s497
    %v501 = vmul.f32 %v111, %v500
    %v502 = vmul.f32 %v118, %v500
    %v503 = vstv %s498
    %v504 = vadd.f32 %v501, %v503
    %v505 = vadd.f32 %v502, %v503
    %v506 = vmax.f32 %v504, 0.0
    %v507 = vmax.f32 %v505, 0.0
    %v508 = vstv %s499
    %v509 = vmul.f32 %v506, %v508
    %v510 = vmul.f32 %v507, %v508
    %v511 = vadd.f32 %v495, %v509
    %v512 = vadd.f32 %v496, %v510
    %s513 = sld [smem:[#allocation2 + $0xf]]
    %s514 = sld [smem:[#allocation2 + $0x1f]]
    %s515 = sld [smem:[#allocation2 + $0x2f]]
    %v516 = vstv %s513
    %v517 = vmul.f32 %v111, %v516
    %v518 = vmul.f32 %v118, %v516
    %v519 = vstv %s514
    %v520 = vadd.f32 %v517, %v519
    %v521 = vadd.f32 %v518, %v519
    %v522 = vmax.f32 %v520, 0.0
    %v523 = vmax.f32 %v521, 0.0
    %v524 = vstv %s515
    %v525 = vmul.f32 %v522, %v524
    %v526 = vmul.f32 %v523, %v524
    %v527 = vadd.f32 %v511, %v525
    %v528 = vadd.f32 %v512, %v526
    %530 = vrot.lane.b32.xlu0 %v272, 112
    %v531 = vpop.permute.xlu0 %530
    %vm532 = vcmask 130048
    %v534 = vsel %vm532, %v271, 0
    %v537 = vsel %vm532, %v531, 0
    %539 = vmatprep.subr.bf16.mxu0 0
    %540 = vmatpush1.bf16.xpose.msra.mxu0 %v537
    %541 = vmatprep.subr.bf16.mxu0 0
    %542 = vmatpush1.bf16.xpose.msra.mxu0 0
    %543 = vmatprep.subr.bf16.mxu0 0
    %544 = vmatpush1.bf16.xpose.msra.mxu0 0
    %545 = vmatprep.subr.bf16.mxu0 0
    %546 = vmatpush1.bf16.xpose.msra.mxu0 0
    %547 = vmatprep.subr.bf16.mxu0 0
    %548 = vmatpush1.bf16.xpose.msra.mxu0 0
    %549 = vmatprep.subr.bf16.mxu0 0
    %550 = vmatpush1.bf16.xpose.msra.mxu0 0
    %551 = vmatprep.subr.bf16.mxu0 0
    %552 = vmatpush1.bf16.xpose.msra.mxu0 0
    %553 = vmatprep.subr.bf16.mxu0 0
    %554 = vmatpush1.bf16.xpose.msra.mxu0 0
    %555 = vmatprep.subr.bf16.mxu0 0
    %556 = vmatpush1.bf16.xpose.msra.mxu0 0
    %557 = vmatprep.subr.bf16.mxu0 0
    %558 = vmatpush1.bf16.xpose.msra.mxu0 0
    %559 = vmatprep.subr.bf16.mxu0 0
    %560 = vmatpush1.bf16.xpose.msra.mxu0 0
    %561 = vmatprep.subr.bf16.mxu0 0
    %562 = vmatpush1.bf16.xpose.msra.mxu0 0
    %563 = vmatprep.subr.bf16.mxu0 0
    %564 = vmatpush1.bf16.xpose.msra.mxu0 0
    %565 = vmatprep.subr.bf16.mxu0 0
    %566 = vmatpush1.bf16.xpose.msra.mxu0 0
    %567 = vmatprep.subr.bf16.mxu0 0
    %568 = vmatpush1.bf16.xpose.msra.mxu0 0
    %569 = vmatprep.subr.bf16.mxu0 0
    %570 = vmatpush1.bf16.xpose.msra.mxu0 0
    %571 = vmatprep.mubr.bf16.mxu0 0
    %572 = vmatmul.mubr.bf16.gmra.mrb[0].mxu0 %v534
    %v573 = vpop.f32.mrb[0].mxu0
    %v574 = vadd.f32 %v527, %v573
    %v575 = vpop.f32.mrb[0].mxu0
    %v576 = vpop.f32.mrb[0].mxu0
    %v577 = vadd.f32 %v528, %v576
    %v578 = vpop.f32.mrb[0].mxu0
    %579 = vdwg.mxu0
    %s580 = sld [smem:[#allocation2 + $0x30]]
    %v581 = vstv %s580
    %v582 = vadd.f32 %v574, %v581
    %v583 = vadd.f32 %v577, %v581
    %v584 = vsel %vm101, %v582, -1e+30
    %v585 = vsel %vm102, %v583, -1e+30
    %v586 = vsel %vm153, %v584, -inf
    %587 = vmax.xlane.f32.xlu0 %v586
    %v588 = vpop.xlane.xlu0 %587
    %vm589 = vcmask 93184
    %v590 = vsel %vm589, %v585, -inf
    %591 = vmax.xlane.f32.xlu0 %v590
    %v592 = vpop.xlane.xlu0 %591
    %v593 = vsub.f32 %v584, %v588
    %v594 = vsub.f32 %v585, %v592
    %v595 = vmul.f32 %v593, 1.442695
    %v596 = vpow.pop %v595
    %v597 = vmul.f32 %v594, 1.442695
    %v598 = vpow.pop %v597
    %v599 = vmul.f32 %v596, %v39
    %v600 = vmul.f32 %v598, %v40
    %v601 = vsel %vm153, %v599, 0.0
    %602 = vadd.xlane.f32.xlu0 %v601
    %v603 = vpop.xlane.xlu0 %602
    %v604 = vsel %vm589, %v600, 0.0
    %605 = vadd.xlane.f32.xlu0 %v604
    %v606 = vpop.xlane.xlu0 %605
    %v607 = vmax.f32 %v603, 1e-20
    %v608 = vmax.f32 %v606, 1e-20
    %v609 = vrcp.pop %v607
    %v610 = vrcp.pop %v608
    %v611 = vmul.f32 %v599, %v609
    %v612 = vmul.f32 %v600, %v610
    %v613 = vld [vmem:[%s3 + $0x18] sm:$0x1]
    %v614 = vld [vmem:[%s3 + $0x20] sm:$0xff]
    %v615 = vld [vmem:[%s3 + $0x28] sm:$0xff]
    %v616 = vld [vmem:[%s3 + $0x30] sm:$0xff]
    %v617 = vld [vmem:[%s3 + $0x38] sm:$0xff]
    %v618 = vld [vmem:[%s3 + $0x40] sm:$0xf]
    %621 = vrot.lane.b32.xlu0 %v611, 12
    %v622 = vpop.permute.xlu0 %621
    %623 = vrot.lane.b32.xlu0 %v612, 12
    %v624 = vpop.permute.xlu0 %623
    %627 = vrot.lane.b32.xlu0 %v611, 24
    %v628 = vpop.permute.xlu0 %627
    %629 = vrot.lane.b32.xlu0 %v612, 24
    %v630 = vpop.permute.xlu0 %629
    %v633 = vsel %vm153, %v611, %v622
    %v634 = vsel %vm153, %v612, %v624
    %v635 = vsel %vm156, %v633, %v628
    %v636 = vsel %vm156, %v634, %v630
    %v637 = vmul.f32 %v635, %v157
    %v638 = vmul.f32 %v636, %v158
    %641 = vrot.lane.b32.xlu0 %v637, 12
    %v642 = vpop.permute.xlu0 %641
    %643 = vrot.lane.b32.xlu0 %v638, 12
    %v644 = vpop.permute.xlu0 %643
    %v647 = vsel %vm153, %v611, %v642
    %v648 = vsel %vm153, %v612, %v644
    %v649 = vlaneseq
    %v650 = vshrl.u32 %v649, 7
    %v651 = vsub.s32 0, %v650
    %v652 = vrot.slane %v613, %v651
    %654 = vrot.lane.b32.xlu0 %v652, 32
    %v655 = vpop.permute.xlu0 %654
    %v657 = vadd.f32 %v263, %v655
    %v658 = vadd.f32 %v266, %v655
    %v664 = vrot.slane %v614, 4
    %v665 = vrot.slane %v615, 4
    %v666 = vsel %vm172, %v664, %v665
    %v667 = vrot.slane %v616, 4
    %v668 = vsel %vm172, %v665, %v667
    %v669 = vrot.slane %v617, 4
    %v670 = vsel %vm172, %v667, %v669
    %v671 = vrot.slane %v618, 4
    %v672 = vsel %vm172, %v669, %v671
    %673 = vrot.lane.b32.xlu0 %v664, 32
    %v674 = vpop.permute.xlu0 %673
    %675 = vrot.lane.b32.xlu0 %v666, 32
    %v676 = vpop.permute.xlu0 %675
    %677 = vrot.lane.b32.xlu0 %v668, 32
    %v678 = vpop.permute.xlu0 %677
    %679 = vrot.lane.b32.xlu0 %v670, 32
    %v680 = vpop.permute.xlu0 %679
    %681 = vrot.lane.b32.xlu0 %v672, 32
    %v682 = vpop.permute.xlu0 %681
    %v688 = vsel %vm172, %v658, %v674
    %v689 = vpack.c.bf16 %v648, %v647
    %v690 = vpack.c.bf16 %v688, %v657
    %v691 = vpack.c.bf16 %v678, %v676
    %v692 = vpack.c.bf16 %v682, %v680
    %696 = vrot.lane.b32.xlu0 %v690, 96
    %v697 = vpop.permute.xlu0 %696
    %698 = vrot.lane.b32.xlu0 %v691, 96
    %v699 = vpop.permute.xlu0 %698
    %700 = vrot.lane.b32.xlu0 %v692, 96
    %v701 = vpop.permute.xlu0 %700
    %vm705 = vcmask 392192
    %v707 = vsel %vm705, %v689, 0
    %709 = vmatprep.subr.bf16.mxu0 0
    %710 = vmatpush1.bf16.msra.mxu0 %v697
    %711 = vmatprep.subr.bf16.mxu0 0
    %712 = vmatpush1.bf16.msra.mxu0 %v699
    %713 = vmatprep.subr.bf16.mxu0 0
    %714 = vmatpush1.bf16.msra.mxu0 %v701
    %715 = vmatprep.subr.bf16.mxu0 0
    %716 = vmatpush1.bf16.msra.mxu0 0
    %717 = vmatprep.subr.bf16.mxu0 0
    %718 = vmatpush1.bf16.msra.mxu0 0
    %719 = vmatprep.subr.bf16.mxu0 0
    %720 = vmatpush1.bf16.msra.mxu0 0
    %721 = vmatprep.subr.bf16.mxu0 0
    %722 = vmatpush1.bf16.msra.mxu0 0
    %723 = vmatprep.subr.bf16.mxu0 0
    %724 = vmatpush1.bf16.msra.mxu0 0
    %725 = vmatprep.subr.bf16.mxu0 0
    %726 = vmatpush1.bf16.msra.mxu0 0
    %727 = vmatprep.subr.bf16.mxu0 0
    %728 = vmatpush1.bf16.msra.mxu0 0
    %729 = vmatprep.subr.bf16.mxu0 0
    %730 = vmatpush1.bf16.msra.mxu0 0
    %731 = vmatprep.subr.bf16.mxu0 0
    %732 = vmatpush1.bf16.msra.mxu0 0
    %733 = vmatprep.subr.bf16.mxu0 0
    %734 = vmatpush1.bf16.msra.mxu0 0
    %735 = vmatprep.subr.bf16.mxu0 0
    %736 = vmatpush1.bf16.msra.mxu0 0
    %737 = vmatprep.subr.bf16.mxu0 0
    %738 = vmatpush1.bf16.msra.mxu0 0
    %739 = vmatprep.subr.bf16.mxu0 0
    %740 = vmatpush1.bf16.msra.mxu0 0
    %741 = vmatprep.mubr.bf16.mxu0 0
    %742 = vmatmul.mubr.bf16.gmra.mrb[0].mxu0 %v707
    %v743 = vpop.f32.mrb[0].mxu0
    %v744 = vadd.f32 0.0, %v743
    %v745 = vpop.f32.mrb[0].mxu0
    %v746 = vpop.f32.mrb[0].mxu0
    %v747 = vadd.f32 0.0, %v746
    %v748 = vpop.f32.mrb[0].mxu0
    %749 = vdwg.mxu0
    %s750 = sld [smem:[#allocation2 + $0x80]]
    %s751 = sld [smem:[#allocation2 + $0x90]]
    %s752 = sld [smem:[#allocation2 + $0xa0]]
    %v753 = vstv %s750
    %v754 = vmul.f32 %v120, %v753
    %v755 = vmul.f32 %v122, %v753
    %v756 = vstv %s751
    %v757 = vadd.f32 %v754, %v756
    %v758 = vadd.f32 %v755, %v756
    %v759 = vmax.f32 %v757, 0.0
    %v760 = vmax.f32 %v758, 0.0
    %v761 = vstv %s752
    %v762 = vmul.f32 %v759, %v761
    %v763 = vmul.f32 %v760, %v761
    %v764 = vadd.f32 %v762, 0.0
    %v765 = vadd.f32 %v763, 0.0
    %s766 = sld [smem:[#allocation2 + $0x81]]
    %s767 = sld [smem:[#allocation2 + $0x91]]
    %s768 = sld [smem:[#allocation2 + $0xa1]]
    %v769 = vstv %s766
    %v770 = vmul.f32 %v120, %v769
    %v771 = vmul.f32 %v122, %v769
    %v772 = vstv %s767
    %v773 = vadd.f32 %v770, %v772
    %v774 = vadd.f32 %v771, %v772
    %v775 = vmax.f32 %v773, 0.0
    %v776 = vmax.f32 %v774, 0.0
    %v777 = vstv %s768
    %v778 = vmul.f32 %v775, %v777
    %v779 = vmul.f32 %v776, %v777
    %v780 = vadd.f32 %v764, %v778
    %v781 = vadd.f32 %v765, %v779
    %s782 = sld [smem:[#allocation2 + $0x82]]
    %s783 = sld [smem:[#allocation2 + $0x92]]
    %s784 = sld [smem:[#allocation2 + $0xa2]]
    %v785 = vstv %s782
    %v786 = vmul.f32 %v120, %v785
    %v787 = vmul.f32 %v122, %v785
    %v788 = vstv %s783
    %v789 = vadd.f32 %v786, %v788
    %v790 = vadd.f32 %v787, %v788
    %v791 = vmax.f32 %v789, 0.0
    %v792 = vmax.f32 %v790, 0.0
    %v793 = vstv %s784
    %v794 = vmul.f32 %v791, %v793
    %v795 = vmul.f32 %v792, %v793
    %v796 = vadd.f32 %v780, %v794
    %v797 = vadd.f32 %v781, %v795
    %s798 = sld [smem:[#allocation2 + $0x83]]
    %s799 = sld [smem:[#allocation2 + $0x93]]
    %s800 = sld [smem:[#allocation2 + $0xa3]]
    %v801 = vstv %s798
    %v802 = vmul.f32 %v120, %v801
    %v803 = vmul.f32 %v122, %v801
    %v804 = vstv %s799
    %v805 = vadd.f32 %v802, %v804
    %v806 = vadd.f32 %v803, %v804
    %v807 = vmax.f32 %v805, 0.0
    %v808 = vmax.f32 %v806, 0.0
    %v809 = vstv %s800
    %v810 = vmul.f32 %v807, %v809
    %v811 = vmul.f32 %v808, %v809
    %v812 = vadd.f32 %v796, %v810
    %v813 = vadd.f32 %v797, %v811
    %s814 = sld [smem:[#allocation2 + $0x84]]
    %s815 = sld [smem:[#allocation2 + $0x94]]
    %s816 = sld [smem:[#allocation2 + $0xa4]]
    %v817 = vstv %s814
    %v818 = vmul.f32 %v120, %v817
    %v819 = vmul.f32 %v122, %v817
    %v820 = vstv %s815
    %v821 = vadd.f32 %v818, %v820
    %v822 = vadd.f32 %v819, %v820
    %v823 = vmax.f32 %v821, 0.0
    %v824 = vmax.f32 %v822, 0.0
    %v825 = vstv %s816
    %v826 = vmul.f32 %v823, %v825
    %v827 = vmul.f32 %v824, %v825
    %v828 = vadd.f32 %v812, %v826
    %v829 = vadd.f32 %v813, %v827
    %s830 = sld [smem:[#allocation2 + $0x85]]
    %s831 = sld [smem:[#allocation2 + $0x95]]
    %s832 = sld [smem:[#allocation2 + $0xa5]]
    %v833 = vstv %s830
    %v834 = vmul.f32 %v120, %v833
    %v835 = vmul.f32 %v122, %v833
    %v836 = vstv %s831
    %v837 = vadd.f32 %v834, %v836
    %v838 = vadd.f32 %v835, %v836
    %v839 = vmax.f32 %v837, 0.0
    %v840 = vmax.f32 %v838, 0.0
    %v841 = vstv %s832
    %v842 = vmul.f32 %v839, %v841
    %v843 = vmul.f32 %v840, %v841
    %v844 = vadd.f32 %v828, %v842
    %v845 = vadd.f32 %v829, %v843
    %s846 = sld [smem:[#allocation2 + $0x86]]
    %s847 = sld [smem:[#allocation2 + $0x96]]
    %s848 = sld [smem:[#allocation2 + $0xa6]]
    %v849 = vstv %s846
    %v850 = vmul.f32 %v120, %v849
    %v851 = vmul.f32 %v122, %v849
    %v852 = vstv %s847
    %v853 = vadd.f32 %v850, %v852
    %v854 = vadd.f32 %v851, %v852
    %v855 = vmax.f32 %v853, 0.0
    %v856 = vmax.f32 %v854, 0.0
    %v857 = vstv %s848
    %v858 = vmul.f32 %v855, %v857
    %v859 = vmul.f32 %v856, %v857
    %v860 = vadd.f32 %v844, %v858
    %v861 = vadd.f32 %v845, %v859
    %s862 = sld [smem:[#allocation2 + $0x87]]
    %s863 = sld [smem:[#allocation2 + $0x97]]
    %s864 = sld [smem:[#allocation2 + $0xa7]]
    %v865 = vstv %s862
    %v866 = vmul.f32 %v120, %v865
    %v867 = vmul.f32 %v122, %v865
    %v868 = vstv %s863
    %v869 = vadd.f32 %v866, %v868
    %v870 = vadd.f32 %v867, %v868
    %v871 = vmax.f32 %v869, 0.0
    %v872 = vmax.f32 %v870, 0.0
    %v873 = vstv %s864
    %v874 = vmul.f32 %v871, %v873
    %v875 = vmul.f32 %v872, %v873
    %v876 = vadd.f32 %v860, %v874
    %v877 = vadd.f32 %v861, %v875
    %s878 = sld [smem:[#allocation2 + $0x88]]
    %s879 = sld [smem:[#allocation2 + $0x98]]
    %s880 = sld [smem:[#allocation2 + $0xa8]]
    %v881 = vstv %s878
    %v882 = vmul.f32 %v120, %v881
    %v883 = vmul.f32 %v122, %v881
    %v884 = vstv %s879
    %v885 = vadd.f32 %v882, %v884
    %v886 = vadd.f32 %v883, %v884
    %v887 = vmax.f32 %v885, 0.0
    %v888 = vmax.f32 %v886, 0.0
    %v889 = vstv %s880
    %v890 = vmul.f32 %v887, %v889
    %v891 = vmul.f32 %v888, %v889
    %v892 = vadd.f32 %v876, %v890
    %v893 = vadd.f32 %v877, %v891
    %s894 = sld [smem:[#allocation2 + $0x89]]
    %s895 = sld [smem:[#allocation2 + $0x99]]
    %s896 = sld [smem:[#allocation2 + $0xa9]]
    %v897 = vstv %s894
    %v898 = vmul.f32 %v120, %v897
    %v899 = vmul.f32 %v122, %v897
    %v900 = vstv %s895
    %v901 = vadd.f32 %v898, %v900
    %v902 = vadd.f32 %v899, %v900
    %v903 = vmax.f32 %v901, 0.0
    %v904 = vmax.f32 %v902, 0.0
    %v905 = vstv %s896
    %v906 = vmul.f32 %v903, %v905
    %v907 = vmul.f32 %v904, %v905
    %v908 = vadd.f32 %v892, %v906
    %v909 = vadd.f32 %v893, %v907
    %s910 = sld [smem:[#allocation2 + $0x8a]]
    %s911 = sld [smem:[#allocation2 + $0x9a]]
    %s912 = sld [smem:[#allocation2 + $0xaa]]
    %v913 = vstv %s910
    %v914 = vmul.f32 %v120, %v913
    %v915 = vmul.f32 %v122, %v913
    %v916 = vstv %s911
    %v917 = vadd.f32 %v914, %v916
    %v918 = vadd.f32 %v915, %v916
    %v919 = vmax.f32 %v917, 0.0
    %v920 = vmax.f32 %v918, 0.0
    %v921 = vstv %s912
    %v922 = vmul.f32 %v919, %v921
    %v923 = vmul.f32 %v920, %v921
    %v924 = vadd.f32 %v908, %v922
    %v925 = vadd.f32 %v909, %v923
    %s926 = sld [smem:[#allocation2 + $0x8b]]
    %s927 = sld [smem:[#allocation2 + $0x9b]]
    %s928 = sld [smem:[#allocation2 + $0xab]]
    %v929 = vstv %s926
    %v930 = vmul.f32 %v120, %v929
    %v931 = vmul.f32 %v122, %v929
    %v932 = vstv %s927
    %v933 = vadd.f32 %v930, %v932
    %v934 = vadd.f32 %v931, %v932
    %v935 = vmax.f32 %v933, 0.0
    %v936 = vmax.f32 %v934, 0.0
    %v937 = vstv %s928
    %v938 = vmul.f32 %v935, %v937
    %v939 = vmul.f32 %v936, %v937
    %v940 = vadd.f32 %v924, %v938
    %v941 = vadd.f32 %v925, %v939
    %s942 = sld [smem:[#allocation2 + $0x8c]]
    %s943 = sld [smem:[#allocation2 + $0x9c]]
    %s944 = sld [smem:[#allocation2 + $0xac]]
    %v945 = vstv %s942
    %v946 = vmul.f32 %v120, %v945
    %v947 = vmul.f32 %v122, %v945
    %v948 = vstv %s943
    %v949 = vadd.f32 %v946, %v948
    %v950 = vadd.f32 %v947, %v948
    %v951 = vmax.f32 %v949, 0.0
    %v952 = vmax.f32 %v950, 0.0
    %v953 = vstv %s944
    %v954 = vmul.f32 %v951, %v953
    %v955 = vmul.f32 %v952, %v953
    %v956 = vadd.f32 %v940, %v954
    %v957 = vadd.f32 %v941, %v955
    %s958 = sld [smem:[#allocation2 + $0x8d]]
    %s959 = sld [smem:[#allocation2 + $0x9d]]
    %s960 = sld [smem:[#allocation2 + $0xad]]
    %v961 = vstv %s958
    %v962 = vmul.f32 %v120, %v961
    %v963 = vmul.f32 %v122, %v961
    %v964 = vstv %s959
    %v965 = vadd.f32 %v962, %v964
    %v966 = vadd.f32 %v963, %v964
    %v967 = vmax.f32 %v965, 0.0
    %v968 = vmax.f32 %v966, 0.0
    %v969 = vstv %s960
    %v970 = vmul.f32 %v967, %v969
    %v971 = vmul.f32 %v968, %v969
    %v972 = vadd.f32 %v956, %v970
    %v973 = vadd.f32 %v957, %v971
    %s974 = sld [smem:[#allocation2 + $0x8e]]
    %s975 = sld [smem:[#allocation2 + $0x9e]]
    %s976 = sld [smem:[#allocation2 + $0xae]]
    %v977 = vstv %s974
    %v978 = vmul.f32 %v120, %v977
    %v979 = vmul.f32 %v122, %v977
    %v980 = vstv %s975
    %v981 = vadd.f32 %v978, %v980
    %v982 = vadd.f32 %v979, %v980
    %v983 = vmax.f32 %v981, 0.0
    %v984 = vmax.f32 %v982, 0.0
    %v985 = vstv %s976
    %v986 = vmul.f32 %v983, %v985
    %v987 = vmul.f32 %v984, %v985
    %v988 = vadd.f32 %v972, %v986
    %v989 = vadd.f32 %v973, %v987
    %s990 = sld [smem:[#allocation2 + $0x8f]]
    %s991 = sld [smem:[#allocation2 + $0x9f]]
    %s992 = sld [smem:[#allocation2 + $0xaf]]
    %v993 = vstv %s990
    %v994 = vmul.f32 %v120, %v993
    %v995 = vmul.f32 %v122, %v993
    %v996 = vstv %s991
    %v997 = vadd.f32 %v994, %v996
    %v998 = vadd.f32 %v995, %v996
    %v999 = vmax.f32 %v997, 0.0
    %v1000 = vmax.f32 %v998, 0.0
    %v1001 = vstv %s992
    %v1002 = vmul.f32 %v999, %v1001
    %v1003 = vmul.f32 %v1000, %v1001
    %v1004 = vadd.f32 %v988, %v1002
    %v1005 = vadd.f32 %v989, %v1003
    %1007 = vrot.lane.b32.xlu0 %v271, 92
    %v1008 = vpop.permute.xlu0 %1007
    %1009 = vrot.lane.b32.xlu0 %v272, 76
    %v1010 = vpop.permute.xlu0 %1009
    %v1012 = vsel %vm532, %v1008, 0
    %v1015 = vsel %vm532, %v1010, 0
    %1017 = vmatprep.subr.bf16.mxu0 0
    %1018 = vmatpush1.bf16.xpose.msra.mxu0 %v1015
    %1019 = vmatprep.subr.bf16.mxu0 0
    %1020 = vmatpush1.bf16.xpose.msra.mxu0 0
    %1021 = vmatprep.subr.bf16.mxu0 0
    %1022 = vmatpush1.bf16.xpose.msra.mxu0 0
    %1023 = vmatprep.subr.bf16.mxu0 0
    %1024 = vmatpush1.bf16.xpose.msra.mxu0 0
    %1025 = vmatprep.subr.bf16.mxu0 0
    %1026 = vmatpush1.bf16.xpose.msra.mxu0 0
    %1027 = vmatprep.subr.bf16.mxu0 0
    %1028 = vmatpush1.bf16.xpose.msra.mxu0 0
    %1029 = vmatprep.subr.bf16.mxu0 0
    %1030 = vmatpush1.bf16.xpose.msra.mxu0 0
    %1031 = vmatprep.subr.bf16.mxu0 0
    %1032 = vmatpush1.bf16.xpose.msra.mxu0 0
    %1033 = vmatprep.subr.bf16.mxu0 0
    %1034 = vmatpush1.bf16.xpose.msra.mxu0 0
    %1035 = vmatprep.subr.bf16.mxu0 0
    %1036 = vmatpush1.bf16.xpose.msra.mxu0 0
    %1037 = vmatprep.subr.bf16.mxu0 0
    %1038 = vmatpush1.bf16.xpose.msra.mxu0 0
    %1039 = vmatprep.subr.bf16.mxu0 0
    %1040 = vmatpush1.bf16.xpose.msra.mxu0 0
    %1041 = vmatprep.subr.bf16.mxu0 0
    %1042 = vmatpush1.bf16.xpose.msra.mxu0 0
    %1043 = vmatprep.subr.bf16.mxu0 0
    %1044 = vmatpush1.bf16.xpose.msra.mxu0 0
    %1045 = vmatprep.subr.bf16.mxu0 0
    %1046 = vmatpush1.bf16.xpose.msra.mxu0 0
    %1047 = vmatprep.subr.bf16.mxu0 0
    %1048 = vmatpush1.bf16.xpose.msra.mxu0 0
    %1049 = vmatprep.mubr.bf16.mxu0 0
    %1050 = vmatmul.mubr.bf16.gmra.mrb[0].mxu0 %v1012
    %v1051 = vpop.f32.mrb[0].mxu0
    %v1052 = vadd.f32 %v1004, %v1051
    %v1053 = vpop.f32.mrb[0].mxu0
    %v1054 = vpop.f32.mrb[0].mxu0
    %v1055 = vadd.f32 %v1005, %v1054
    %v1056 = vpop.f32.mrb[0].mxu0
    %1057 = vdwg.mxu0
    %s1058 = sld [smem:[#allocation2 + $0xb0]]
    %v1059 = vstv %s1058
    %v1060 = vadd.f32 %v1052, %v1059
    %v1061 = vadd.f32 %v1055, %v1059
    %v1062 = vsel %vm101, %v1060, -1e+30
    %v1063 = vsel %vm102, %v1061, -1e+30
    %v1064 = vsel %vm153, %v1062, -inf
    %1065 = vmax.xlane.f32.xlu0 %v1064
    %v1066 = vpop.xlane.xlu0 %1065
    %v1067 = vsel %vm589, %v1063, -inf
    %1068 = vmax.xlane.f32.xlu0 %v1067
    %v1069 = vpop.xlane.xlu0 %1068
    %v1070 = vsub.f32 %v1062, %v1066
    %v1071 = vsub.f32 %v1063, %v1069
    %v1072 = vmul.f32 %v1070, 1.442695
    %v1073 = vpow.pop %v1072
    %v1074 = vmul.f32 %v1071, 1.442695
    %v1075 = vpow.pop %v1074
    %v1076 = vmul.f32 %v1073, %v39
    %v1077 = vmul.f32 %v1075, %v40
    %v1078 = vsel %vm153, %v1076, 0.0
    %1079 = vadd.xlane.f32.xlu0 %v1078
    %v1080 = vpop.xlane.xlu0 %1079
    %v1081 = vsel %vm589, %v1077, 0.0
    %1082 = vadd.xlane.f32.xlu0 %v1081
    %v1083 = vpop.xlane.xlu0 %1082
    %v1084 = vmax.f32 %v1080, 1e-20
    %v1085 = vmax.f32 %v1083, 1e-20
    %v1086 = vrcp.pop %v1084
    %v1087 = vrcp.pop %v1085
    %v1088 = vmul.f32 %v1076, %v1086
    %v1089 = vmul.f32 %v1077, %v1087
    %1092 = vrot.lane.b32.xlu0 %v1088, 12
    %v1093 = vpop.permute.xlu0 %1092
    %1094 = vrot.lane.b32.xlu0 %v1089, 12
    %v1095 = vpop.permute.xlu0 %1094
    %1098 = vrot.lane.b32.xlu0 %v1088, 24
    %v1099 = vpop.permute.xlu0 %1098
    %1100 = vrot.lane.b32.xlu0 %v1089, 24
    %v1101 = vpop.permute.xlu0 %1100
    %v1104 = vsel %vm153, %v1088, %v1093
    %v1105 = vsel %vm153, %v1089, %v1095
    %v1106 = vsel %vm156, %v1104, %v1099
    %v1107 = vsel %vm156, %v1105, %v1101
    %v1108 = vmul.f32 %v1106, %v157
    %v1109 = vmul.f32 %v1107, %v158
    %1112 = vrot.lane.b32.xlu0 %v1108, 12
    %v1113 = vpop.permute.xlu0 %1112
    %1114 = vrot.lane.b32.xlu0 %v1109, 12
    %v1115 = vpop.permute.xlu0 %1114
    %v1118 = vsel %vm153, %v1088, %v1113
    %v1119 = vsel %vm153, %v1089, %v1115
    %1120 = vrot.lane.b32.xlu0 %v652, 64
    %v1121 = vpop.permute.xlu0 %1120
    %v1123 = vadd.f32 %v263, %v1121
    %v1124 = vadd.f32 %v266, %v1121
    %1125 = vrot.lane.b32.xlu0 %v664, 64
    %v1126 = vpop.permute.xlu0 %1125
    %1127 = vrot.lane.b32.xlu0 %v666, 64
    %v1128 = vpop.permute.xlu0 %1127
    %1129 = vrot.lane.b32.xlu0 %v668, 64
    %v1130 = vpop.permute.xlu0 %1129
    %1131 = vrot.lane.b32.xlu0 %v670, 64
    %v1132 = vpop.permute.xlu0 %1131
    %1133 = vrot.lane.b32.xlu0 %v672, 64
    %v1134 = vpop.permute.xlu0 %1133
    %v1140 = vsel %vm172, %v1124, %v1126
    %v1141 = vpack.c.bf16 %v1119, %v1118
    %v1142 = vpack.c.bf16 %v1140, %v1123
    %v1143 = vpack.c.bf16 %v1130, %v1128
    %v1144 = vpack.c.bf16 %v1134, %v1132
    %1148 = vrot.lane.b32.xlu0 %v1142, 60
    %v1149 = vpop.permute.xlu0 %1148
    %1150 = vrot.lane.b32.xlu0 %v1143, 60
    %v1151 = vpop.permute.xlu0 %1150
    %1152 = vrot.lane.b32.xlu0 %v1144, 60
    %v1153 = vpop.permute.xlu0 %1152
    %v1158 = vsel %vm705, %v1141, 0
    %1160 = vmatprep.subr.bf16.mxu0 0
    %1161 = vmatpush1.bf16.msra.mxu0 %v1149
    %1162 = vmatprep.subr.bf16.mxu0 0
    %1163 = vmatpush1.bf16.msra.mxu0 %v1151
    %1164 = vmatprep.subr.bf16.mxu0 0
    %1165 = vmatpush1.bf16.msra.mxu0 %v1153
    %1166 = vmatprep.subr.bf16.mxu0 0
    %1167 = vmatpush1.bf16.msra.mxu0 0
    %1168 = vmatprep.subr.bf16.mxu0 0
    %1169 = vmatpush1.bf16.msra.mxu0 0
    %1170 = vmatprep.subr.bf16.mxu0 0
    %1171 = vmatpush1.bf16.msra.mxu0 0
    %1172 = vmatprep.subr.bf16.mxu0 0
    %1173 = vmatpush1.bf16.msra.mxu0 0
    %1174 = vmatprep.subr.bf16.mxu0 0
    %1175 = vmatpush1.bf16.msra.mxu0 0
    %1176 = vmatprep.subr.bf16.mxu0 0
    %1177 = vmatpush1.bf16.msra.mxu0 0
    %1178 = vmatprep.subr.bf16.mxu0 0
    %1179 = vmatpush1.bf16.msra.mxu0 0
    %1180 = vmatprep.subr.bf16.mxu0 0
    %1181 = vmatpush1.bf16.msra.mxu0 0
    %1182 = vmatprep.subr.bf16.mxu0 0
    %1183 = vmatpush1.bf16.msra.mxu0 0
    %1184 = vmatprep.subr.bf16.mxu0 0
    %1185 = vmatpush1.bf16.msra.mxu0 0
    %1186 = vmatprep.subr.bf16.mxu0 0
    %1187 = vmatpush1.bf16.msra.mxu0 0
    %1188 = vmatprep.subr.bf16.mxu0 0
    %1189 = vmatpush1.bf16.msra.mxu0 0
    %1190 = vmatprep.subr.bf16.mxu0 0
    %1191 = vmatpush1.bf16.msra.mxu0 0
    %1192 = vmatprep.mubr.bf16.mxu0 0
    %1193 = vmatmul.mubr.bf16.gmra.mrb[0].mxu0 %v1158
    %v1194 = vpop.f32.mrb[0].mxu0
    %v1195 = vadd.f32 0.0, %v1194
    %v1196 = vpop.f32.mrb[0].mxu0
    %v1197 = vpop.f32.mrb[0].mxu0
    %v1198 = vadd.f32 0.0, %v1197
    %v1199 = vpop.f32.mrb[0].mxu0
    %1200 = vdwg.mxu0
    %1203 = vrot.lane.b32.xlu0 %v1195, 4
    %v1204 = vpop.permute.xlu0 %1203
    %1205 = vrot.lane.b32.xlu0 %v1198, 4
    %v1206 = vpop.permute.xlu0 %1205
    %vm1209 = vcmask 31744
    %v1210 = vsel %vm1209, %v744, %v1204
    %v1211 = vsel %vm1209, %v747, %v1206
    %v1212 = vpack.c.bf16 %v41, %v41
    %v1213 = vpack.c.bf16 %v1211, %v1210
    %v1215 = vsel %vm153, %v1212, 0
    %vm1217 = vcmask 1045504
    %v1219 = vsel %vm1217, %v1213, 0
    %1221 = vmatprep.subr.bf16.mxu0 0
    %1222 = vmatpush1.bf16.msra.mxu0 %v1219
    %1223 = vmatprep.subr.bf16.mxu0 0
    %1224 = vmatpush1.bf16.msra.mxu0 0
    %1225 = vmatprep.subr.bf16.mxu0 0
    %1226 = vmatpush1.bf16.msra.mxu0 0
    %1227 = vmatprep.subr.bf16.mxu0 0
    %1228 = vmatpush1.bf16.msra.mxu0 0
    %1229 = vmatprep.subr.bf16.mxu0 0
    %1230 = vmatpush1.bf16.msra.mxu0 0
    %1231 = vmatprep.subr.bf16.mxu0 0
    %1232 = vmatpush1.bf16.msra.mxu0 0
    %1233 = vmatprep.subr.bf16.mxu0 0
    %1234 = vmatpush1.bf16.msra.mxu0 0
    %1235 = vmatprep.subr.bf16.mxu0 0
    %1236 = vmatpush1.bf16.msra.mxu0 0
    %1237 = vmatprep.subr.bf16.mxu0 0
    %1238 = vmatpush1.bf16.msra.mxu0 0
    %1239 = vmatprep.subr.bf16.mxu0 0
    %1240 = vmatpush1.bf16.msra.mxu0 0
    %1241 = vmatprep.subr.bf16.mxu0 0
    %1242 = vmatpush1.bf16.msra.mxu0 0
    %1243 = vmatprep.subr.bf16.mxu0 0
    %1244 = vmatpush1.bf16.msra.mxu0 0
    %1245 = vmatprep.subr.bf16.mxu0 0
    %1246 = vmatpush1.bf16.msra.mxu0 0
    %1247 = vmatprep.subr.bf16.mxu0 0
    %1248 = vmatpush1.bf16.msra.mxu0 0
    %1249 = vmatprep.subr.bf16.mxu0 0
    %1250 = vmatpush1.bf16.msra.mxu0 0
    %1251 = vmatprep.subr.bf16.mxu0 0
    %1252 = vmatpush1.bf16.msra.mxu0 0
    %1253 = vmatprep.mubr.bf16.mxu0 0
    %1254 = vmatmul.mubr.bf16.gmra.mrb[0].mxu0 %v1215
    %v1255 = vpop.f32.mrb[0].mxu0
    %v1256 = vadd.f32 0.0, %v1255
    %v1257 = vpop.f32.mrb[0].mxu0
    %v1258 = vpop.f32.mrb[0].mxu0
    %v1259 = vpop.f32.mrb[0].mxu0
    %1260 = vdwg.mxu0
    %v1261 = vpack.c.bf16 %v1256, %v1256
    %v1262 = vpack.c.bf16 %v38, %v38
    %v1264 = vsel %vm221, %v1261, 0
    %v1267 = vsel %vm172, %v1262, 0
    %1269 = vmatprep.subr.bf16.mxu0 0
    %1270 = vmatpush1.bf16.msra.mxu0 %v1267
    %1271 = vmatprep.subr.bf16.mxu0 0
    %1272 = vmatpush1.bf16.msra.mxu0 0
    %1273 = vmatprep.subr.bf16.mxu0 0
    %1274 = vmatpush1.bf16.msra.mxu0 0
    %1275 = vmatprep.subr.bf16.mxu0 0
    %1276 = vmatpush1.bf16.msra.mxu0 0
    %1277 = vmatprep.subr.bf16.mxu0 0
    %1278 = vmatpush1.bf16.msra.mxu0 0
    %1279 = vmatprep.subr.bf16.mxu0 0
    %1280 = vmatpush1.bf16.msra.mxu0 0
    %1281 = vmatprep.subr.bf16.mxu0 0
    %1282 = vmatpush1.bf16.msra.mxu0 0
    %1283 = vmatprep.subr.bf16.mxu0 0
    %1284 = vmatpush1.bf16.msra.mxu0 0
    %1285 = vmatprep.subr.bf16.mxu0 0
    %1286 = vmatpush1.bf16.msra.mxu0 0
    %1287 = vmatprep.subr.bf16.mxu0 0
    %1288 = vmatpush1.bf16.msra.mxu0 0
    %1289 = vmatprep.subr.bf16.mxu0 0
    %1290 = vmatpush1.bf16.msra.mxu0 0
    %1291 = vmatprep.subr.bf16.mxu0 0
    %1292 = vmatpush1.bf16.msra.mxu0 0
    %1293 = vmatprep.subr.bf16.mxu0 0
    %1294 = vmatpush1.bf16.msra.mxu0 0
    %1295 = vmatprep.subr.bf16.mxu0 0
    %1296 = vmatpush1.bf16.msra.mxu0 0
    %1297 = vmatprep.subr.bf16.mxu0 0
    %1298 = vmatpush1.bf16.msra.mxu0 0
    %1299 = vmatprep.subr.bf16.mxu0 0
    %1300 = vmatpush1.bf16.msra.mxu0 0
    %1301 = vmatprep.mubr.bf16.mxu0 0
    %1302 = vmatmul.mubr.bf16.gmra.mrb[0].mxu0 %v1264
    %v1303 = vpop.f32.mrb[0].mxu0
    %v1304 = vadd.f32 0.0, %v1303
    %v1305 = vpop.f32.mrb[0].mxu0
    %v1306 = vpop.f32.mrb[0].mxu0
    %v1307 = vpop.f32.mrb[0].mxu0
    %1308 = vdwg.mxu0
    %vm1309 = vcmask 58368
    %1310 = vst.msk [vmem:[#allocation5] sm:$0x3] %vm1309, %v1304
    // Predicated region
    $region26: #{forward.1} parent=1 // pred_check
      _
    $region27: #{forward.1} parent=1 // pred_check_branch
      %1312 = sbr.rel (0) target = $region29
    $region28: #{forward.1} parent=1 // pred_region
      %s1314 = ssub.s32 32, 32
      %1315 = vsyncadd [#allocation3], %s1314
      %s1317 = sshll.u32 [#allocation5], 4
      %s1318 = int_to_ptr.vmem [resolvable:$true] %s1317
      %1320 = dma.vmem_to_hbm [thread:$0]  %s1318, 32, %s5, [#allocation3]
    $region29: #{forward.1} parent=1 // pred_fallthru
      _
    // Predicated region
    $region30: #{forward.1} parent=1 // pred_check
      _
    $region31: #{forward.1} parent=1 // pred_check_branch
      %1322 = sbr.rel (0) target = $region33
    $region32: #{forward.1} parent=1 // pred_region
      %1323 = dma.done [#allocation3], 32
    $region33: #{forward.1} parent=1 // pred_fallthru
      _
    %1324 = vsyncpa [#allocation3], 1
    %1325 = vsyncpa [#allocation4], 1

</llo_original>
